<compile_context>
chip_gen: v7x
topology: tpu7x:2x2x1
jax: 0.10.0
libtpu: 0.0.40
codegen_flags: <defaults>
</compile_context>

<pallas_src>
import math
import functools

import jax
import jax.numpy as jnp
from jax import lax
from jax.experimental import pallas as pl
from jax.experimental.pallas import tpu as pltpu


# dot_general dimension numbers for y = a @ b.T (contract last dim of both
# operands) -- the MXU contracts over in_features directly, no transpose op.
_CDIMS = (((1,), (1,)), ((), ()))


def transformer_block_kernel(x_ref, wqkv_ref, bqkv_ref, wo_ref, bo_ref,
                             ln1_g_ref, ln1_b_ref, w1_ref, b1_ref,
                             w2_ref, b2_ref, ln2_g_ref, ln2_b_ref,
                             o_ref, *, num_heads, d_k, eps):
    f32 = jnp.float32
    mxu = wqkv_ref.dtype                     # bf16 operands for every matmul
    x = x_ref[0].astype(f32)                 # (S, D) residual stream in f32
    S, D = x.shape
    H = num_heads

    # ---- fused Q/K/V projection: one wide MXU matmul (N = 3*D) --------------
    qkv = lax.dot_general(x.astype(mxu), wqkv_ref[...], _CDIMS,
                          preferred_element_type=f32) + bqkv_ref[...]   # (S, 3D)

    # ---- head-batched attention: (S, 3D) -> (3H, S, d_k), single relayout ---
    qkv_h = jnp.transpose(qkv.reshape(S, 3 * H, d_k), (1, 0, 2))
    q = (qkv_h[:H] * (1.0 / math.sqrt(d_k))).astype(mxu)   # scale folded into q
    k = qkv_h[H:2 * H].astype(mxu)
    v = qkv_h[2 * H:].astype(mxu)

    scores = jnp.einsum("hqd,hkd->hqk", q, k,
                        preferred_element_type=f32)          # (H, S, S) f32
    scores = scores - jnp.max(scores, axis=-1, keepdims=True)
    p = jnp.exp(scores)
    denom = jnp.sum(p, axis=-1, keepdims=True)               # (H, S, 1)
    ctx = jnp.einsum("hqk,hkd->hqd", p.astype(mxu), v,
                     preferred_element_type=f32)              # (H, S, d_k)
    # normalize after the PV matmul: O(H*S*d_k) instead of O(H*S*S); EUP slot
    ctx = ctx * pl.reciprocal(denom, approx=True)
    # TODO(synk): attention dropout omitted (identity in eval mode).

    # ---- merge heads -> (S, D); ONE full-K output projection -----------------
    ctx_m = jnp.transpose(ctx, (1, 0, 2)).reshape(S, D)
    attn_out = lax.dot_general(ctx_m.astype(mxu), wo_ref[...], _CDIMS,
                               preferred_element_type=f32) + bo_ref[...]

    # ---- residual + LayerNorm1 (f32) -----------------------------------------
    y = x + attn_out
    mu = jnp.mean(y, axis=-1, keepdims=True)
    var = jnp.mean((y - mu) ** 2, axis=-1, keepdims=True)
    y = (y - mu) * lax.rsqrt(var + eps) * ln1_g_ref[...] + ln1_b_ref[...]

    # ---- feed-forward (Linear -> ReLU -> Linear), bf16 operands --------------
    h1 = lax.dot_general(y.astype(mxu), w1_ref[...], _CDIMS,
                         preferred_element_type=f32) + b1_ref[...]      # (S, F)
    h1 = jnp.maximum(h1, 0.0)
    ff = lax.dot_general(h1.astype(mxu), w2_ref[...], _CDIMS,
                         preferred_element_type=f32) + b2_ref[...]      # (S, D)

    # ---- residual + LayerNorm2 (f32) ------------------------------------------
    z = y + ff
    mu2 = jnp.mean(z, axis=-1, keepdims=True)
    var2 = jnp.mean((z - mu2) ** 2, axis=-1, keepdims=True)
    z = (z - mu2) * lax.rsqrt(var2 + eps) * ln2_g_ref[...] + ln2_b_ref[...]

    o_ref[0] = z.astype(o_ref.dtype)


def transformer_block(x, p, *, num_heads):
    B, S, D = x.shape
    dff = p["w1"].shape[0]

    kernel = functools.partial(transformer_block_kernel,
                               num_heads=num_heads, d_k=D // num_heads, eps=1e-5)

    def wspec(shape):
        # Constant block index across the grid -> weights stay VMEM-resident;
        # Buffered(1) drops the unused second pipeline buffer (v7x 64 MiB VMEM).
        return pl.BlockSpec(shape, lambda b: (0,) * len(shape),
                            pipeline_mode=pl.Buffered(1))

    return pl.pallas_call(
        kernel,
        out_shape=jax.ShapeDtypeStruct((B, S, D), x.dtype),
        grid=(B,),
        in_specs=[
            pl.BlockSpec((1, S, D), lambda b: (b, 0, 0)),    # x
            wspec((3 * D, D)), wspec((1, 3 * D)),            # fused qkv (bf16 / f32 bias)
            wspec((D, D)), wspec((1, D)),                    # out proj
            wspec((1, D)), wspec((1, D)),                    # ln1 gamma/beta
            wspec((dff, D)), wspec((1, dff)),                # ffn linear 1
            wspec((D, dff)), wspec((1, D)),                  # ffn linear 2
            wspec((1, D)), wspec((1, D)),                    # ln2 gamma/beta
        ],
        out_specs=pl.BlockSpec((1, S, D), lambda b: (b, 0, 0)),
        compiler_params=pltpu.CompilerParams(
            dimension_semantics=("parallel",),
            vmem_limit_bytes=64 * 1024 * 1024),
    )(x, p["wqkv"], p["bqkv"], p["wo"], p["bo"],
      p["ln1_g"], p["ln1_b"], p["w1"], p["b1"],
      p["w2"], p["b2"], p["ln2_g"], p["ln2_b"])


def lm_head_kernel(x_ref, w_ref, o_ref):
    logits = lax.dot_general(x_ref[0].astype(w_ref.dtype), w_ref[...], _CDIMS,
                             preferred_element_type=jnp.float32)
    o_ref[0] = logits.astype(o_ref.dtype)


def lm_head(x, lm_w, *, tv=256):
    B, S, D = x.shape
    V = lm_w.shape[0]
    tv = min(tv, V)
    # TODO(synk): pad the vocab to a multiple of the tile for production sizes.
    assert V % tv == 0, "vocab must be a multiple of the vocab tile"
    return pl.pallas_call(
        lm_head_kernel,
        out_shape=jax.ShapeDtypeStruct((B, S, V), jnp.float32),
        # Vocab tile on the slow axis: each tied-embedding weight tile is
        # streamed from HBM exactly once; the small (S, D) x block is re-fetched.
        grid=(V // tv, B),
        in_specs=[
            pl.BlockSpec((1, S, D), lambda j, b: (b, 0, 0)),
            pl.BlockSpec((tv, D), lambda j, b: (j, 0)),
        ],
        out_specs=pl.BlockSpec((1, S, tv), lambda j, b: (b, 0, j)),
        compiler_params=pltpu.CompilerParams(
            dimension_semantics=("parallel", "parallel"),
            vmem_limit_bytes=32 * 1024 * 1024),
    )(x, lm_w)


def make_positional_encoding(max_len, d_model):
    position = jnp.arange(max_len, dtype=jnp.float32)[:, None]
    div_term = jnp.exp(jnp.arange(0, d_model, 2, dtype=jnp.float32)
                       * (-math.log(10000.0) / d_model))
    ang = position * div_term                                  # (max_len, D/2)
    return jnp.stack([jnp.sin(ang), jnp.cos(ang)], axis=-1).reshape(max_len, d_model)


def prepare_layer_params(layers, mxu_dtype=jnp.bfloat16):
    """One-time parameter prep (outside the jitted forward): fuse Q/K/V weights
    and cast all matmul weights to bf16; biases / LN params stay f32."""
    f32 = jnp.float32
    prepared = []
    for p in layers:
        prepared.append(dict(
            wqkv=jnp.concatenate([p["wq"], p["wk"], p["wv"]], axis=0).astype(mxu_dtype),
            bqkv=jnp.concatenate([p["bq"], p["bk"], p["bv"]], axis=1).astype(f32),
            wo=p["wo"].astype(mxu_dtype), bo=p["bo"].astype(f32),
            ln1_g=p["ln1_g"].astype(f32), ln1_b=p["ln1_b"].astype(f32),
            w1=p["w1"].astype(mxu_dtype), b1=p["b1"].astype(f32),
            w2=p["w2"].astype(mxu_dtype), b2=p["b2"].astype(f32),
            ln2_g=p["ln2_g"].astype(f32), ln2_b=p["ln2_b"].astype(f32),
        ))
    return prepared


def production_transformer(tokens, emb, pe, prepared_layers, lm_w, *, num_heads):
    D = emb.shape[1]
    S = tokens.shape[1]
    # TODO(synk): embedding row gather + positional add left to XLA (could be a
    # scalar-prefetch Element-BlockSpec Pallas kernel, but no win at these sizes).
    x = jnp.take(emb, tokens, axis=0) * math.sqrt(D) + pe[:S]
    for lp in prepared_layers:
        x = transformer_block(x, lp, num_heads=num_heads)
    return lm_head(x, lm_w)          # tied weights: logits = x @ E.T


# ----------------------------- pure-JAX reference -----------------------------
def reference_transformer(tokens, emb, pe, layers, *, num_heads):
    HIGH = jax.lax.Precision.HIGHEST
    B, S = tokens.shape
    D = emb.shape[1]
    dk = D // num_heads
    x = jnp.take(emb, tokens, axis=0) * math.sqrt(D) + pe[:S]

    def lin(t, w, b):
        return jnp.einsum("bsd,od->bso", t, w, precision=HIGH) + b[0]

    def layer_norm(t, g, b, eps=1e-5):
        mu = jnp.mean(t, axis=-1, keepdims=True)
        var = jnp.mean((t - mu) ** 2, axis=-1, keepdims=True)
        return (t - mu) / jnp.sqrt(var + eps) * g[0] + b[0]

    for p in layers:
        q = lin(x, p["wq"], p["bq"]).reshape(B, S, num_heads, dk).transpose(0, 2, 1, 3)
        k = lin(x, p["wk"], p["bk"]).reshape(B, S, num_heads, dk).transpose(0, 2, 1, 3)
        v = lin(x, p["wv"], p["bv"]).reshape(B, S, num_heads, dk).transpose(0, 2, 1, 3)
        scores = jnp.einsum("bhqd,bhkd->bhqk", q, k, precision=HIGH) / math.sqrt(dk)
        attn = jax.nn.softmax(scores, axis=-1)
        ctx = jnp.einsum("bhqk,bhkd->bhqd", attn, v, precision=HIGH)
        ctx = ctx.transpose(0, 2, 1, 3).reshape(B, S, D)
        x = layer_norm(x + lin(ctx, p["wo"], p["bo"]), p["ln1_g"], p["ln1_b"])
        ff = lin(jax.nn.relu(lin(x, p["w1"], p["b1"])), p["w2"], p["b2"])
        x = layer_norm(x + ff, p["ln2_g"], p["ln2_b"])
    return jnp.einsum("bsd,vd->bsv", x, emb, precision=HIGH)


if __name__ == "__main__":
    B, S, D, H, DFF, V, L = 2, 8, 32, 4, 64, 256, 2

    key = jax.random.PRNGKey(0)
    keys = iter(jax.random.split(key, 64))

    def nrm(shape, scale):
        return (scale * jax.random.normal(next(keys), shape)).astype(jnp.float32)

    emb = nrm((V, D), 0.1)
    pe = make_positional_encoding(64, D)

    layers = []
    for _ in range(L):
        layers.append(dict(
            wq=nrm((D, D), 0.1), bq=nrm((1, D), 0.02),
            wk=nrm((D, D), 0.1), bk=nrm((1, D), 0.02),
            wv=nrm((D, D), 0.1), bv=nrm((1, D), 0.02),
            wo=nrm((D, D), 0.1), bo=nrm((1, D), 0.02),
            ln1_g=(1.0 + nrm((1, D), 0.1)), ln1_b=nrm((1, D), 0.05),
            w1=nrm((DFF, D), 0.1), b1=nrm((1, DFF), 0.02),
            w2=nrm((D, DFF), 0.1), b2=nrm((1, D), 0.02),
            ln2_g=(1.0 + nrm((1, D), 0.1)), ln2_b=nrm((1, D), 0.05),
        ))

    tokens = jax.random.randint(next(keys), (B, S), 0, V)

    # One-time parameter preparation (hoisted out of the jitted forward):
    prepared = prepare_layer_params(layers)
    lm_w = emb.astype(jnp.bfloat16)            # tied lm_head weight, bf16 MXU operand

    fwd = jax.jit(functools.partial(production_transformer, num_heads=H))
    logits = jax.block_until_ready(fwd(tokens, emb, pe, prepared, lm_w))

    ref = reference_transformer(tokens, emb, pe, layers, num_heads=H)

    assert logits.shape == (B, S, V), logits.shape
    # bf16 MXU operands + approx reciprocal vs a HIGHEST-precision f32 reference
    # give ~1% relative error; 3e-2 tolerance leaves margin.
    assert jnp.allclose(logits, ref, atol=3e-2, rtol=3e-2), (
        "mismatch vs reference: max abs err "
        f"{float(jnp.max(jnp.abs(logits - ref)))}")

    print("KERNEL_OK")
</pallas_src>

<mosaic_0001>
module attributes {stable_mosaic.version = 11 : i64} {
  func.func @lm_head_kernel(%arg0: i32, %arg1: i32, %arg2: memref<1x8x32xf32, #tpu.memory_space<vmem>>, %arg3: memref<256x32xbf16, #tpu.memory_space<vmem>>, %arg4: memref<1x8x256xf32, #tpu.memory_space<vmem>>) attributes {dimension_semantics = [#tpu.dimension_semantics<parallel>, #tpu.dimension_semantics<parallel>], iteration_bounds = array<i64: 1, 2>, scalar_prefetch = 0 : i64, scratch_operands = 0 : i64, tpu.core_type = #tpu.core_type<tc>, window_params = [{transform_indices = @transform_0, window_bounds = array<i64: 1, 8, 32>}, {transform_indices = @transform_1, window_bounds = array<i64: 256, 32>}, {transform_indices = @transform_2, window_bounds = array<i64: 1, 8, 256>}]} {
    %c0 = arith.constant 0 : index
    %c0_0 = arith.constant 0 : index
    %c0_1 = arith.constant 0 : index
    %0 = vector.load %arg2[%c0, %c0_0, %c0_1] : memref<1x8x32xf32, #tpu.memory_space<vmem>>, vector<1x8x32xf32>
    %1 = vector.shape_cast %0 : vector<1x8x32xf32> to vector<8x32xf32>
    %2 = arith.truncf %1 : vector<8x32xf32> to vector<8x32xbf16>
    %c0_2 = arith.constant 0 : index
    %c0_3 = arith.constant 0 : index
    %3 = vector.load %arg3[%c0_2, %c0_3] : memref<256x32xbf16, #tpu.memory_space<vmem>>, vector<256x32xbf16>
    %cst = arith.constant dense<0.000000e+00> : vector<8x256xf32>
    %4 = tpu.matmul %2, %3, %cst {dimension_numbers = #tpu.dot_dimension_numbers<[1], [1], [0], [0], [0, 0, 1, 0], [], []>} : vector<8x32xbf16>, vector<256x32xbf16>, vector<8x256xf32> -> vector<8x256xf32>
    %c0_4 = arith.constant 0 : index
    %c0_5 = arith.constant 0 : index
    %c0_6 = arith.constant 0 : index
    %5 = vector.load %arg4[%c0_4, %c0_5, %c0_6] : memref<1x8x256xf32, #tpu.memory_space<vmem>>, vector<1x8x256xf32>
    %6 = vector.shape_cast %5 : vector<1x8x256xf32> to vector<8x256xf32>
    %7 = vector.shape_cast %4 : vector<8x256xf32> to vector<1x8x256xf32>
    tpu.vector_store %arg4[%c0_4, %c0_5, %c0_6], %7 {strides = array<i32>} : memref<1x8x256xf32, #tpu.memory_space<vmem>>, vector<1x8x256xf32>,
    return
  }
  func.func @transform_0(%arg0: i32, %arg1: i32) -> (i32, i32, i32) {
    %c0_i32 = arith.constant 0 : i32
    %c0_i32_0 = arith.constant 0 : i32
    %c0_i32_1 = arith.constant 0 : i32
    return %arg1, %c0_i32, %c0_i32_0 : i32, i32, i32
  }
  func.func @transform_1(%arg0: i32, %arg1: i32) -> (i32, i32) {
    %c0_i32 = arith.constant 0 : i32
    %c0_i32_0 = arith.constant 0 : i32
    return %arg0, %c0_i32 : i32, i32
  }
  func.func @transform_2(%arg0: i32, %arg1: i32) -> (i32, i32, i32) {
    %c0_i32 = arith.constant 0 : i32
    %c0_i32_0 = arith.constant 0 : i32
    return %arg1, %c0_i32, %arg0 : i32, i32, i32
  }
}

module attributes {stable_mosaic.version = 11 : i64} {
  func.func @transformer_block_kernel(%arg0: i32, %arg1: memref<1x8x32xf32, #tpu.memory_space<vmem>>, %arg2: memref<96x32xbf16, #tpu.memory_space<vmem>>, %arg3: memref<1x96xf32, #tpu.memory_space<vmem>>, %arg4: memref<32x32xbf16, #tpu.memory_space<vmem>>, %arg5: memref<1x32xf32, #tpu.memory_space<vmem>>, %arg6: memref<1x32xf32, #tpu.memory_space<vmem>>, %arg7: memref<1x32xf32, #tpu.memory_space<vmem>>, %arg8: memref<64x32xbf16, #tpu.memory_space<vmem>>, %arg9: memref<1x64xf32, #tpu.memory_space<vmem>>, %arg10: memref<32x64xbf16, #tpu.memory_space<vmem>>, %arg11: memref<1x32xf32, #tpu.memory_space<vmem>>, %arg12: memref<1x32xf32, #tpu.memory_space<vmem>>, %arg13: memref<1x32xf32, #tpu.memory_space<vmem>>, %arg14: memref<1x8x32xf32, #tpu.memory_space<vmem>>) attributes {dimension_semantics = [#tpu.dimension_semantics<parallel>], iteration_bounds = array<i64: 2>, scalar_prefetch = 0 : i64, scratch_operands = 0 : i64, tpu.core_type = #tpu.core_type<tc>, window_params = [{transform_indices = @transform_0, window_bounds = array<i64: 1, 8, 32>}, {pipeline_mode = #tpu.pipeline_mode<synchronous>, transform_indices = @transform_1, window_bounds = array<i64: 96, 32>}, {pipeline_mode = #tpu.pipeline_mode<synchronous>, transform_indices = @transform_2, window_bounds = array<i64: 1, 96>}, {pipeline_mode = #tpu.pipeline_mode<synchronous>, transform_indices = @transform_3, window_bounds = array<i64: 32, 32>}, {pipeline_mode = #tpu.pipeline_mode<synchronous>, transform_indices = @transform_4, window_bounds = array<i64: 1, 32>}, {pipeline_mode = #tpu.pipeline_mode<synchronous>, transform_indices = @transform_5, window_bounds = array<i64: 1, 32>}, {pipeline_mode = #tpu.pipeline_mode<synchronous>, transform_indices = @transform_6, window_bounds = array<i64: 1, 32>}, {pipeline_mode = #tpu.pipeline_mode<synchronous>, transform_indices = @transform_7, window_bounds = array<i64: 64, 32>}, {pipeline_mode = #tpu.pipeline_mode<synchronous>, transform_indices = @transform_8, window_bounds = array<i64: 1, 64>}, {pipeline_mode = #tpu.pipeline_mode<synchronous>, transform_indices = @transform_9, window_bounds = array<i64: 32, 64>}, {pipeline_mode = #tpu.pipeline_mode<synchronous>, transform_indices = @transform_10, window_bounds = array<i64: 1, 32>}, {pipeline_mode = #tpu.pipeline_mode<synchronous>, transform_indices = @transform_11, window_bounds = array<i64: 1, 32>}, {pipeline_mode = #tpu.pipeline_mode<synchronous>, transform_indices = @transform_12, window_bounds = array<i64: 1, 32>}, {transform_indices = @transform_13, window_bounds = array<i64: 1, 8, 32>}]} {
    %c0 = arith.constant 0 : index
    %c0_0 = arith.constant 0 : index
    %c0_1 = arith.constant 0 : index
    %0 = vector.load %arg1[%c0, %c0_0, %c0_1] : memref<1x8x32xf32, #tpu.memory_space<vmem>>, vector<1x8x32xf32>
    %1 = vector.shape_cast %0 : vector<1x8x32xf32> to vector<8x32xf32>
    %2 = arith.truncf %1 : vector<8x32xf32> to vector<8x32xbf16>
    %c0_2 = arith.constant 0 : index
    %c0_3 = arith.constant 0 : index
    %3 = vector.load %arg2[%c0_2, %c0_3] : memref<96x32xbf16, #tpu.memory_space<vmem>>, vector<96x32xbf16>
    %cst = arith.constant dense<0.000000e+00> : vector<8x96xf32>
    %4 = tpu.matmul %2, %3, %cst {dimension_numbers = #tpu.dot_dimension_numbers<[1], [1], [0], [0], [0, 0, 1, 0], [], []>} : vector<8x32xbf16>, vector<96x32xbf16>, vector<8x96xf32> -> vector<8x96xf32>
    %c0_4 = arith.constant 0 : index
    %c0_5 = arith.constant 0 : index
    %5 = vector.load %arg3[%c0_4, %c0_5] : memref<1x96xf32, #tpu.memory_space<vmem>>, vector<1x96xf32>
    %6 = vector.broadcast %5 : vector<1x96xf32> to vector<8x96xf32>
    %7 = arith.addf %4, %6 : vector<8x96xf32>
    %8 = vector.shape_cast %7 : vector<8x96xf32> to vector<8x12x8xf32>
    %9 = tpu.transpose %8, [1, 0, 2] : vector<8x12x8xf32> -> vector<12x8x8xf32>
    %10 = vector.extract_strided_slice %9 {offsets = [0, 0, 0], sizes = [4, 8, 8], strides = [1, 1, 1]} : vector<12x8x8xf32> to vector<4x8x8xf32>
    %cst_6 = arith.constant 0.353553385 : f32
    %11 = vector.broadcast %cst_6 : f32 to vector<4x8x8xf32>
    %12 = arith.mulf %10, %11 : vector<4x8x8xf32>
    %13 = arith.truncf %12 : vector<4x8x8xf32> to vector<4x8x8xbf16>
    %14 = vector.extract_strided_slice %9 {offsets = [4, 0, 0], sizes = [4, 8, 8], strides = [1, 1, 1]} : vector<12x8x8xf32> to vector<4x8x8xf32>
    %15 = arith.truncf %14 : vector<4x8x8xf32> to vector<4x8x8xbf16>
    %16 = vector.extract_strided_slice %9 {offsets = [8, 0, 0], sizes = [4, 8, 8], strides = [1, 1, 1]} : vector<12x8x8xf32> to vector<4x8x8xf32>
    %17 = arith.truncf %16 : vector<4x8x8xf32> to vector<4x8x8xbf16>
    "tpu.trace_start"() <{level = 10 : i32, message = "hqd,hkd->hqk"}> : () -> ()
    %cst_7 = arith.constant dense<0.000000e+00> : vector<4x8x8xf32>
    %18 = tpu.matmul %13, %15, %cst_7 {dimension_numbers = #tpu.dot_dimension_numbers<[2], [2], [1], [1], [0, 0, 0, 1, 1, 1], [0], [0]>} : vector<4x8x8xbf16>, vector<4x8x8xbf16>, vector<4x8x8xf32> -> vector<4x8x8xf32>
    "tpu.trace_stop"() : () -> ()
    %cst_8 = arith.constant dense<0xFF800000> : vector<4x8xf32>
    %19 = vector.multi_reduction <maximumf>, %18, %cst_8 [2] : vector<4x8x8xf32> to vector<4x8xf32>
    %20 = vector.shape_cast %19 : vector<4x8xf32> to vector<4x8x1xf32>
    %21 = vector.broadcast %20 : vector<4x8x1xf32> to vector<4x8x8xf32>
    %22 = arith.subf %18, %21 : vector<4x8x8xf32>
    %23 = math.exp %22 : vector<4x8x8xf32>
    %cst_9 = arith.constant dense<0.000000e+00> : vector<4x8xf32>
    %24 = vector.multi_reduction <add>, %23, %cst_9 [2] : vector<4x8x8xf32> to vector<4x8xf32>
    %25 = vector.shape_cast %24 : vector<4x8xf32> to vector<4x8x1xf32>
    %26 = arith.truncf %23 : vector<4x8x8xf32> to vector<4x8x8xbf16>
    "tpu.trace_start"() <{level = 10 : i32, message = "hqk,hkd->hqd"}> : () -> ()
    %cst_10 = arith.constant dense<0.000000e+00> : vector<4x8x8xf32>
    %27 = tpu.matmul %26, %17, %cst_10 {dimension_numbers = #tpu.dot_dimension_numbers<[2], [1], [1], [2], [0, 0, 0, 1, 1, 2], [0], [0]>} : vector<4x8x8xbf16>, vector<4x8x8xbf16>, vector<4x8x8xf32> -> vector<4x8x8xf32>
    "tpu.trace_stop"() : () -> ()
    %28 = tpu.reciprocal %25 {approx = true} : vector<4x8x1xf32> -> vector<4x8x1xf32>
    %29 = vector.broadcast %28 : vector<4x8x1xf32> to vector<4x8x8xf32>
    %30 = arith.mulf %27, %29 : vector<4x8x8xf32>
    %31 = tpu.transpose %30, [1, 0, 2] : vector<4x8x8xf32> -> vector<8x4x8xf32>
    %32 = vector.shape_cast %31 : vector<8x4x8xf32> to vector<8x32xf32>
    %33 = arith.truncf %32 : vector<8x32xf32> to vector<8x32xbf16>
    %c0_11 = arith.constant 0 : index
    %c0_12 = arith.constant 0 : index
    %34 = vector.load %arg4[%c0_11, %c0_12] : memref<32x32xbf16, #tpu.memory_space<vmem>>, vector<32x32xbf16>
    %cst_13 = arith.constant dense<0.000000e+00> : vector<8x32xf32>
    %35 = tpu.matmul %33, %34, %cst_13 {dimension_numbers = #tpu.dot_dimension_numbers<[1], [1], [0], [0], [0, 0, 1, 0], [], []>} : vector<8x32xbf16>, vector<32x32xbf16>, vector<8x32xf32> -> vector<8x32xf32>
    %c0_14 = arith.constant 0 : index
    %c0_15 = arith.constant 0 : index
    %36 = vector.load %arg5[%c0_14, %c0_15] : memref<1x32xf32, #tpu.memory_space<vmem>>, vector<1x32xf32>
    %37 = vector.broadcast %36 : vector<1x32xf32> to vector<8x32xf32>
    %38 = arith.addf %35, %37 : vector<8x32xf32>
    %39 = arith.addf %1, %38 : vector<8x32xf32>
    %cst_16 = arith.constant dense<0.000000e+00> : vector<8xf32>
    %40 = vector.multi_reduction <add>, %39, %cst_16 [1] : vector<8x32xf32> to vector<8xf32>
    %41 = vector.shape_cast %40 : vector<8xf32> to vector<8x1xf32>
    %cst_17 = arith.constant 3.200000e+01 : f32
    %42 = vector.broadcast %cst_17 : f32 to vector<8x1xf32>
    %43 = arith.divf %41, %42 : vector<8x1xf32>
    %44 = vector.broadcast %43 : vector<8x1xf32> to vector<8x32xf32>
    %45 = arith.subf %39, %44 : vector<8x32xf32>
    %46 = arith.mulf %45, %45 : vector<8x32xf32>
    %cst_18 = arith.constant dense<0.000000e+00> : vector<8xf32>
    %47 = vector.multi_reduction <add>, %46, %cst_18 [1] : vector<8x32xf32> to vector<8xf32>
    %48 = vector.shape_cast %47 : vector<8xf32> to vector<8x1xf32>
    %cst_19 = arith.constant 3.200000e+01 : f32
    %49 = vector.broadcast %cst_19 : f32 to vector<8x1xf32>
    %50 = arith.divf %48, %49 : vector<8x1xf32>
    %51 = vector.broadcast %43 : vector<8x1xf32> to vector<8x32xf32>
    %52 = arith.subf %39, %51 : vector<8x32xf32>
    %cst_20 = arith.constant 9.99999974E-6 : f32
    %53 = vector.broadcast %cst_20 : f32 to vector<8x1xf32>
    %54 = arith.addf %50, %53 : vector<8x1xf32>
    %55 = math.rsqrt %54 : vector<8x1xf32>
    %56 = vector.broadcast %55 : vector<8x1xf32> to vector<8x32xf32>
    %57 = arith.mulf %52, %56 : vector<8x32xf32>
    %c0_21 = arith.constant 0 : index
    %c0_22 = arith.constant 0 : index
    %58 = vector.load %arg6[%c0_21, %c0_22] : memref<1x32xf32, #tpu.memory_space<vmem>>, vector<1x32xf32>
    %59 = vector.broadcast %58 : vector<1x32xf32> to vector<8x32xf32>
    %60 = arith.mulf %57, %59 : vector<8x32xf32>
    %c0_23 = arith.constant 0 : index
    %c0_24 = arith.constant 0 : index
    %61 = vector.load %arg7[%c0_23, %c0_24] : memref<1x32xf32, #tpu.memory_space<vmem>>, vector<1x32xf32>
    %62 = vector.broadcast %61 : vector<1x32xf32> to vector<8x32xf32>
    %63 = arith.addf %60, %62 : vector<8x32xf32>
    %64 = arith.truncf %63 : vector<8x32xf32> to vector<8x32xbf16>
    %c0_25 = arith.constant 0 : index
    %c0_26 = arith.constant 0 : index
    %65 = vector.load %arg8[%c0_25, %c0_26] : memref<64x32xbf16, #tpu.memory_space<vmem>>, vector<64x32xbf16>
    %cst_27 = arith.constant dense<0.000000e+00> : vector<8x64xf32>
    %66 = tpu.matmul %64, %65, %cst_27 {dimension_numbers = #tpu.dot_dimension_numbers<[1], [1], [0], [0], [0, 0, 1, 0], [], []>} : vector<8x32xbf16>, vector<64x32xbf16>, vector<8x64xf32> -> vector<8x64xf32>
    %c0_28 = arith.constant 0 : index
    %c0_29 = arith.constant 0 : index
    %67 = vector.load %arg9[%c0_28, %c0_29] : memref<1x64xf32, #tpu.memory_space<vmem>>, vector<1x64xf32>
    %68 = vector.broadcast %67 : vector<1x64xf32> to vector<8x64xf32>
    %69 = arith.addf %66, %68 : vector<8x64xf32>
    %cst_30 = arith.constant 0.000000e+00 : f32
    %70 = vector.broadcast %cst_30 : f32 to vector<8x64xf32>
    %71 = arith.maximumf %69, %70 : vector<8x64xf32>
    %72 = arith.truncf %71 : vector<8x64xf32> to vector<8x64xbf16>
    %c0_31 = arith.constant 0 : index
    %c0_32 = arith.constant 0 : index
    %73 = vector.load %arg10[%c0_31, %c0_32] : memref<32x64xbf16, #tpu.memory_space<vmem>>, vector<32x64xbf16>
    %cst_33 = arith.constant dense<0.000000e+00> : vector<8x32xf32>
    %74 = tpu.matmul %72, %73, %cst_33 {dimension_numbers = #tpu.dot_dimension_numbers<[1], [1], [0], [0], [0, 0, 1, 0], [], []>} : vector<8x64xbf16>, vector<32x64xbf16>, vector<8x32xf32> -> vector<8x32xf32>
    %c0_34 = arith.constant 0 : index
    %c0_35 = arith.constant 0 : index
    %75 = vector.load %arg11[%c0_34, %c0_35] : memref<1x32xf32, #tpu.memory_space<vmem>>, vector<1x32xf32>
    %76 = vector.broadcast %75 : vector<1x32xf32> to vector<8x32xf32>
    %77 = arith.addf %74, %76 : vector<8x32xf32>
    %78 = arith.addf %63, %77 : vector<8x32xf32>
    %cst_36 = arith.constant dense<0.000000e+00> : vector<8xf32>
    %79 = vector.multi_reduction <add>, %78, %cst_36 [1] : vector<8x32xf32> to vector<8xf32>
    %80 = vector.shape_cast %79 : vector<8xf32> to vector<8x1xf32>
    %cst_37 = arith.constant 3.200000e+01 : f32
    %81 = vector.broadcast %cst_37 : f32 to vector<8x1xf32>
    %82 = arith.divf %80, %81 : vector<8x1xf32>
    %83 = vector.broadcast %82 : vector<8x1xf32> to vector<8x32xf32>
    %84 = arith.subf %78, %83 : vector<8x32xf32>
    %85 = arith.mulf %84, %84 : vector<8x32xf32>
    %cst_38 = arith.constant dense<0.000000e+00> : vector<8xf32>
    %86 = vector.multi_reduction <add>, %85, %cst_38 [1] : vector<8x32xf32> to vector<8xf32>
    %87 = vector.shape_cast %86 : vector<8xf32> to vector<8x1xf32>
    %cst_39 = arith.constant 3.200000e+01 : f32
    %88 = vector.broadcast %cst_39 : f32 to vector<8x1xf32>
    %89 = arith.divf %87, %88 : vector<8x1xf32>
    %90 = vector.broadcast %82 : vector<8x1xf32> to vector<8x32xf32>
    %91 = arith.subf %78, %90 : vector<8x32xf32>
    %cst_40 = arith.constant 9.99999974E-6 : f32
    %92 = vector.broadcast %cst_40 : f32 to vector<8x1xf32>
    %93 = arith.addf %89, %92 : vector<8x1xf32>
    %94 = math.rsqrt %93 : vector<8x1xf32>
    %95 = vector.broadcast %94 : vector<8x1xf32> to vector<8x32xf32>
    %96 = arith.mulf %91, %95 : vector<8x32xf32>
    %c0_41 = arith.constant 0 : index
    %c0_42 = arith.constant 0 : index
    %97 = vector.load %arg12[%c0_41, %c0_42] : memref<1x32xf32, #tpu.memory_space<vmem>>, vector<1x32xf32>
    %98 = vector.broadcast %97 : vector<1x32xf32> to vector<8x32xf32>
    %99 = arith.mulf %96, %98 : vector<8x32xf32>
    %c0_43 = arith.constant 0 : index
    %c0_44 = arith.constant 0 : index
    %100 = vector.load %arg13[%c0_43, %c0_44] : memref<1x32xf32, #tpu.memory_space<vmem>>, vector<1x32xf32>
    %101 = vector.broadcast %100 : vector<1x32xf32> to vector<8x32xf32>
    %102 = arith.addf %99, %101 : vector<8x32xf32>
    %c0_45 = arith.constant 0 : index
    %c0_46 = arith.constant 0 : index
    %c0_47 = arith.constant 0 : index
    %103 = vector.load %arg14[%c0_45, %c0_46, %c0_47] : memref<1x8x32xf32, #tpu.memory_space<vmem>>, vector<1x8x32xf32>
    %104 = vector.shape_cast %103 : vector<1x8x32xf32> to vector<8x32xf32>
    %105 = vector.shape_cast %102 : vector<8x32xf32> to vector<1x8x32xf32>
    tpu.vector_store %arg14[%c0_45, %c0_46, %c0_47], %105 {strides = array<i32>} : memref<1x8x32xf32, #tpu.memory_space<vmem>>, vector<1x8x32xf32>,
    return
  }
  func.func @transform_0(%arg0: i32) -> (i32, i32, i32) {
    %c0_i32 = arith.constant 0 : i32
    %c0_i32_0 = arith.constant 0 : i32
    %c0_i32_1 = arith.constant 0 : i32
    return %arg0, %c0_i32, %c0_i32_0 : i32, i32, i32
  }
  func.func @transform_1(%arg0: i32) -> (i32, i32) {
    %c0_i32 = arith.constant 0 : i32
    %c0_i32_0 = arith.constant 0 : i32
    %c0_i32_1 = arith.constant 0 : i32
    return %c0_i32, %c0_i32_0 : i32, i32
  }
  func.func @transform_2(%arg0: i32) -> (i32, i32) {
    %c0_i32 = arith.constant 0 : i32
    %c0_i32_0 = arith.constant 0 : i32
    %c0_i32_1 = arith.constant 0 : i32
    return %c0_i32, %c0_i32_0 : i32, i32
  }
  func.func @transform_3(%arg0: i32) -> (i32, i32) {
    %c0_i32 = arith.constant 0 : i32
    %c0_i32_0 = arith.constant 0 : i32
    %c0_i32_1 = arith.constant 0 : i32
    return %c0_i32, %c0_i32_0 : i32, i32
  }
  func.func @transform_4(%arg0: i32) -> (i32, i32) {
    %c0_i32 = arith.constant 0 : i32
    %c0_i32_0 = arith.constant 0 : i32
    %c0_i32_1 = arith.constant 0 : i32
    return %c0_i32, %c0_i32_0 : i32, i32
  }
  func.func @transform_5(%arg0: i32) -> (i32, i32) {
    %c0_i32 = arith.constant 0 : i32
    %c0_i32_0 = arith.constant 0 : i32
    %c0_i32_1 = arith.constant 0 : i32
    return %c0_i32, %c0_i32_0 : i32, i32
  }
  func.func @transform_6(%arg0: i32) -> (i32, i32) {
    %c0_i32 = arith.constant 0 : i32
    %c0_i32_0 = arith.constant 0 : i32
    %c0_i32_1 = arith.constant 0 : i32
    return %c0_i32, %c0_i32_0 : i32, i32
  }
  func.func @transform_7(%arg0: i32) -> (i32, i32) {
    %c0_i32 = arith.constant 0 : i32
    %c0_i32_0 = arith.constant 0 : i32
    %c0_i32_1 = arith.constant 0 : i32
    return %c0_i32, %c0_i32_0 : i32, i32
  }
  func.func @transform_8(%arg0: i32) -> (i32, i32) {
    %c0_i32 = arith.constant 0 : i32
    %c0_i32_0 = arith.constant 0 : i32
    %c0_i32_1 = arith.constant 0 : i32
    return %c0_i32, %c0_i32_0 : i32, i32
  }
  func.func @transform_9(%arg0: i32) -> (i32, i32) {
    %c0_i32 = arith.constant 0 : i32
    %c0_i32_0 = arith.constant 0 : i32
    %c0_i32_1 = arith.constant 0 : i32
    return %c0_i32, %c0_i32_0 : i32, i32
  }
  func.func @transform_10(%arg0: i32) -> (i32, i32) {
    %c0_i32 = arith.constant 0 : i32
    %c0_i32_0 = arith.constant 0 : i32
    %c0_i32_1 = arith.constant 0 : i32
    return %c0_i32, %c0_i32_0 : i32, i32
  }
  func.func @transform_11(%arg0: i32) -> (i32, i32) {
    %c0_i32 = arith.constant 0 : i32
    %c0_i32_0 = arith.constant 0 : i32
    %c0_i32_1 = arith.constant 0 : i32
    return %c0_i32, %c0_i32_0 : i32, i32
  }
  func.func @transform_12(%arg0: i32) -> (i32, i32) {
    %c0_i32 = arith.constant 0 : i32
    %c0_i32_0 = arith.constant 0 : i32
    %c0_i32_1 = arith.constant 0 : i32
    return %c0_i32, %c0_i32_0 : i32, i32
  }
  func.func @transform_13(%arg0: i32) -> (i32, i32, i32) {
    %c0_i32 = arith.constant 0 : i32
    %c0_i32_0 = arith.constant 0 : i32
    %c0_i32_1 = arith.constant 0 : i32
    return %arg0, %c0_i32, %c0_i32_0 : i32, i32, i32
  }
}

</mosaic_0001>

<llo_original>
// kernel: production_transformer.5
$region0: #{production_transformer.5}
  #allocation0 [shape = 'u32[]', space=smem, size = 0x4, offset = 0x4, fixed_abs, tag = 'smem constant byte address 0x4 - core index']
  #allocation1 [shape = 'u32[144,128]{1,0:T(1,128)}', space=vmem, size = 0x12000, scoped, tag = 'internal scratch']
  %s0 = inlined_call_operand.vmem [shape: f32[2,8,32], index: 0, kind: input, shape index: {}]
  %s1 = inlined_call_operand.vmem [shape: bf16[256,32], index: 1, kind: input, shape index: {}]
  %s2 = inlined_call_operand.hbm [shape: f32[2,8,256], index: 2, kind: output, shape index: {}]
  %s3 = sld [smem:[#allocation0]]
  $region41: #{production_transformer.5} parent=0
    _
  %s5 = ssub.s32 1, %s3
  %s6 = scalar_select 0, %s5, %s3
  $region1: #{production_transformer.5} parent=0
    #allocation2 [shape = 'u8[16384]{0}', space=vmem, size = 0x4000, scoped, tag = 'output window, operand 0']
    #allocation3 [shape = 's32[2]{0}', space=sflag, size = 0x8, scoped, tag = 'scoped memory for production_transformer.5']
    %7 = vsyncpa [#allocation3], 0
    %s8 = scalar_lea.sflag [#allocation3], 1
    %9 = vsyncpa %s8, 0
    loop: start=0, step=1, limit=4
    $region2: #{production_transformer.5} parent=1 // loop_pre_header
      _
    $region3: #{production_transformer.5} parent=1 // loop_header
      %s11 = sphi 0, %s15
      %p12 = scmp.ge.s32.totalorder %s11, 4
      %s18 = sphi 0, %s30
      %s19 = sphi 0, %s26
      %s20 = sphi 0, %s18
      %s21 = sphi 0, %s19
      %s22 = sphi 0, %s20
      %s23 = sphi 0, %s21
      %s33 = sphi 0, %s35
      %s36 = sphi 0, %s33
      %s37 = sphi 0, %s36
      %s53 = sphi 0, %s37
      %s59 = sphi 0, %s61
      %s62 = sphi 0, %s59
      %s63 = sphi 0, %s62
      %s79 = sphi 0, %s63
      %s87 = sphi 0, %s89
      %s90 = sphi 0, %s87
      %s91 = sphi 0, %s90
      %s107 = sphi 0, %s91
    $region4: #{production_transformer.5} parent=1 // loop_header_branch
      %14 = sbr.rel (%p12) target = $region8
    $region5: #{production_transformer.5} parent=1 // loop_body
      %s16 = ssub.s32 %s11, 1
      %s17 = ssub.s32 %s11, 2
      %s24 = sadd.s32 1, %s19
      %p25 = scmp.ge.s32.totalorder %s24, 2
      %s26 = scalar_select %p25, 0, %s24
      %s27 = sadd.s32 1, %s18
      %s28 = scalar_select %p25, %s27, %s18
      %p29 = scmp.ge.s32.totalorder %s28, 1
      %s30 = scalar_select %p29, 0, %s28
      %s31 = ssub.s32 %s19, %s26
      %p32 = scmp.eq.s32.totalorder %s31, 0
      %s34 = sadd.s32 %s33, 1
      %s35 = scalar_select %p32, %s33, %s34
      %p38 = pneg %p32
      %p39 = scmp.eq.s32.totalorder %s11, 1
      %p40 = por %p38, %p39
      %p41 = scmp.ne.s32.totalorder %s33, %s36
      %p42 = scmp.eq.s32.totalorder %s11, 0
      %p43 = por %p41, %p42
      %p44 = scmp.ne.s32.totalorder %s33, %s36
      %p45 = scmp.eq.s32.totalorder %s16, 1
      %p46 = por %p44, %p45
      %p47 = scmp.ne.s32.totalorder %s36, %s37
      %p48 = scmp.eq.s32.totalorder %s16, 0
      %p49 = por %p47, %p48
      %p50 = scmp.ne.s32.totalorder %s36, %s37
      %p51 = scmp.eq.s32.totalorder %s17, 1
      %p52 = por %p50, %p51
      %p54 = scmp.ne.s32.totalorder %s37, %s53
      %p55 = scmp.eq.s32.totalorder %s17, 0
      %p56 = por %p54, %p55
      %s57 = ssub.s32 %s18, %s30
      %p58 = scmp.eq.s32.totalorder %s57, 0
      %s60 = sadd.s32 %s59, 1
      %s61 = scalar_select %p58, %s59, %s60
      %p64 = pneg %p58
      %p65 = scmp.eq.s32.totalorder %s11, 1
      %p66 = por %p64, %p65
      %p67 = scmp.ne.s32.totalorder %s59, %s62
      %p68 = scmp.eq.s32.totalorder %s11, 0
      %p69 = por %p67, %p68
      %p70 = scmp.ne.s32.totalorder %s59, %s62
      %p71 = scmp.eq.s32.totalorder %s16, 1
      %p72 = por %p70, %p71
      %p73 = scmp.ne.s32.totalorder %s62, %s63
      %p74 = scmp.eq.s32.totalorder %s16, 0
      %p75 = por %p73, %p74
      %p76 = scmp.ne.s32.totalorder %s62, %s63
      %p77 = scmp.eq.s32.totalorder %s17, 1
      %p78 = por %p76, %p77
      %p80 = scmp.ne.s32.totalorder %s63, %s79
      %p81 = scmp.eq.s32.totalorder %s17, 0
      %p82 = por %p80, %p81
      %s83 = ssub.s32 %s19, %s26
      %s84 = ssub.s32 %s18, %s30
      %s85 = sor.u32 %s83, %s84
      %p86 = scmp.eq.s32.totalorder %s85, 0
      %s88 = sadd.s32 %s87, 1
      %s89 = scalar_select %p86, %s87, %s88
      %p92 = pneg %p86
      %p93 = scmp.eq.s32.totalorder %s11, 1
      %p94 = por %p92, %p93
      %p95 = scmp.ne.s32.totalorder %s87, %s90
      %p96 = scmp.eq.s32.totalorder %s11, 0
      %p97 = por %p95, %p96
      %p98 = scmp.ne.s32.totalorder %s87, %s90
      %p99 = scmp.eq.s32.totalorder %s16, 1
      %p100 = por %p98, %p99
      %p101 = scmp.ne.s32.totalorder %s90, %s91
      %p102 = scmp.eq.s32.totalorder %s16, 0
      %p103 = por %p101, %p102
      %p104 = scmp.ne.s32.totalorder %s90, %s91
      %p105 = scmp.eq.s32.totalorder %s17, 1
      %p106 = por %p104, %p105
      %p108 = scmp.ne.s32.totalorder %s91, %s107
      %p109 = scmp.eq.s32.totalorder %s17, 0
      %p110 = por %p108, %p109
      %p111 = scmp.le.s32.totalorder 1, %s11
      %p112 = scmp.lt.s32.totalorder %s11, 3
      %p113 = pnand %p111, %p112
      %p114 = pneg %p113
      // Predicated region
      $region9: #{production_transformer.5} parent=5 // pred_check
        _
      $region10: #{production_transformer.5} parent=5 // pred_check_branch
        %116 = sbr.rel (%p113) target = $region12
      $region11: #{production_transformer.5} parent=5 // pred_region
        %s117 = ssub.s32 %s11, 1
        // Predicated region
        $region13: #{production_transformer.5} parent=11 // pred_check
          %p118 = pneg %p75
        $region14: #{production_transformer.5} parent=11 // pred_check_branch
          %120 = sbr.rel (%p118) target = $region16
        $region15: #{production_transformer.5} parent=11 // pred_region
          %s121 = smul.u32 32, %s20
          %p122 = scmp.lt.s32.totalorder %s121, 31
          %s123 = scalar_select %p122, %s121, 31
          %s124 = smul.addr %s123, 4
          %s125 = scalar_lea.vmem %s1, %s124
          %s126 = smul.u32 32, %s20
        $region16: #{production_transformer.5} parent=11 // pred_fallthru
          _
      $region12: #{production_transformer.5} parent=5 // pred_fallthru
        _
      %p127 = scmp.lt.s32.totalorder %s11, 2
      // Predicated region
      $region17: #{production_transformer.5} parent=5 // pred_check
        %p128 = pneg %p127
      $region18: #{production_transformer.5} parent=5 // pred_check_branch
        %130 = sbr.rel (%p128) target = $region20
      $region19: #{production_transformer.5} parent=5 // pred_region
        // Predicated region
        $region21: #{production_transformer.5} parent=19 // pred_check
          %p131 = pneg %p43
        $region22: #{production_transformer.5} parent=19 // pred_check_branch
          %133 = sbr.rel (%p131) target = $region24
        $region23: #{production_transformer.5} parent=19 // pred_region
          %p134 = scmp.lt.s32.totalorder %s19, 1
          %s135 = scalar_select %p134, %s19, 1
          %s136 = smul.addr %s135, 8
          %s137 = scalar_lea.vmem %s0, %s136
        $region24: #{production_transformer.5} parent=19 // pred_fallthru
          _
      $region20: #{production_transformer.5} parent=5 // pred_fallthru
        _
      %p138 = scmp.le.s32.totalorder 1, %s11
      %p139 = scmp.lt.s32.totalorder %s11, 3
      %p140 = pnand %p138, %p139
      %p141 = pneg %p140
      // Predicated region
      $region25: #{production_transformer.5} parent=5 // pred_check
        _
      $region26: #{production_transformer.5} parent=5 // pred_check_branch
        %143 = sbr.rel (%p140) target = $region28
      $region27: #{production_transformer.5} parent=5 // pred_region
        %s144 = ssub.s32 %s11, 1
        %p145 = scmp.lt.s32.totalorder %s21, 1
        %s146 = scalar_select %p145, %s21, 1
        %s147 = smul.addr %s146, 8
        %s148 = scalar_lea.vmem %s0, %s147
        %p149 = pneg %p49
        %p150 = pneg %p46
        %s151 = smul.u32 32, %s20
        %p152 = scmp.lt.s32.totalorder %s151, 31
        %s153 = scalar_select %p152, %s151, 31
        %s154 = smul.addr %s153, 4
        %s155 = scalar_lea.vmem %s1, %s154
        %p156 = pneg %p75
        %p157 = pneg %p72
        %p158 = pneg %p103
        %p159 = pneg %p100
        %s160 = sand.u32 %s90, 1
        %s161 = scalar_lea.sflag [#allocation3], %s160
        %s162 = sand.u32 %s90, 1
        %s163 = smul.addr %s162, 16
        %s164 = scalar_lea.vmem [#allocation2], %s163
        %p165 = scmp.lt.s32.totalorder %s21, 1
        %s166 = scalar_select %p165, %s21, 1
        %s167 = smul.addr %s166, 8
        %s168 = scalar_lea.vmem %s0, %s167
        %s169 = smul.u32 32, %s20
        %p170 = scmp.lt.s32.totalorder %s169, 31
        %s171 = scalar_select %p170, %s169, 31
        %s172 = smul.addr %s171, 4
        %s173 = scalar_lea.vmem %s1, %s172
        %s174 = smul.u32 32, %s20
        %s175 = smul.u32 2, %s20
        %v177 = vld [vmem:[%s168] sm:$0xff]
        %v178 = vpack.c.bf16 %v177, %v177
        %v179 = vld [vmem:[%s173] sm:$0xf]
        %v180 = vld [vmem:[%s173 + $0x4] sm:$0xf]
        %v181 = vld [vmem:[%s173 + $0x8] sm:$0xf]
        %v182 = vld [vmem:[%s173 + $0xc] sm:$0xf]
        %v183 = vld [vmem:[%s173 + $0x10] sm:$0xf]
        %v184 = vld [vmem:[%s173 + $0x14] sm:$0xf]
        %v185 = vld [vmem:[%s173 + $0x18] sm:$0xf]
        %v186 = vld [vmem:[%s173 + $0x1c] sm:$0xf]
        %v187 = vld [vmem:[%s173 + $0x20] sm:$0xf]
        %v188 = vld [vmem:[%s173 + $0x24] sm:$0xf]
        %v189 = vld [vmem:[%s173 + $0x28] sm:$0xf]
        %v190 = vld [vmem:[%s173 + $0x2c] sm:$0xf]
        %v191 = vld [vmem:[%s173 + $0x30] sm:$0xf]
        %v192 = vld [vmem:[%s173 + $0x34] sm:$0xf]
        %v193 = vld [vmem:[%s173 + $0x38] sm:$0xf]
        %v194 = vld [vmem:[%s173 + $0x3c] sm:$0xf]
        %v195 = vld [vmem:[%s173 + $0x40] sm:$0xf]
        %v196 = vld [vmem:[%s173 + $0x44] sm:$0xf]
        %v197 = vld [vmem:[%s173 + $0x48] sm:$0xf]
        %v198 = vld [vmem:[%s173 + $0x4c] sm:$0xf]
        %v199 = vld [vmem:[%s173 + $0x50] sm:$0xf]
        %v200 = vld [vmem:[%s173 + $0x54] sm:$0xf]
        %v201 = vld [vmem:[%s173 + $0x58] sm:$0xf]
        %v202 = vld [vmem:[%s173 + $0x5c] sm:$0xf]
        %v203 = vld [vmem:[%s173 + $0x60] sm:$0xf]
        %v204 = vld [vmem:[%s173 + $0x64] sm:$0xf]
        %v205 = vld [vmem:[%s173 + $0x68] sm:$0xf]
        %v206 = vld [vmem:[%s173 + $0x6c] sm:$0xf]
        %v207 = vld [vmem:[%s173 + $0x70] sm:$0xf]
        %v208 = vld [vmem:[%s173 + $0x74] sm:$0xf]
        %v209 = vld [vmem:[%s173 + $0x78] sm:$0xf]
        %v210 = vld [vmem:[%s173 + $0x7c] sm:$0xf]
        %v243 = vunpack.c.l.b16 %v179
        %v244 = vunpack.c.l.b16 %v180
        %v245 = vunpack.c.l.b16 %v181
        %v246 = vunpack.c.l.b16 %v182
        %v247 = vunpack.c.l.b16 %v183
        %v248 = vunpack.c.l.b16 %v184
        %v249 = vunpack.c.l.b16 %v185
        %v250 = vunpack.c.l.b16 %v186
        %v251 = vunpack.c.l.b16 %v187
        %v252 = vunpack.c.l.b16 %v188
        %v253 = vunpack.c.l.b16 %v189
        %v254 = vunpack.c.l.b16 %v190
        %v255 = vunpack.c.l.b16 %v191
        %v256 = vunpack.c.l.b16 %v192
        %v257 = vunpack.c.l.b16 %v193
        %v258 = vunpack.c.l.b16 %v194
        %v259 = vunpack.c.l.b16 %v195
        %v260 = vunpack.c.l.b16 %v196
        %v261 = vunpack.c.l.b16 %v197
        %v262 = vunpack.c.l.b16 %v198
        %v263 = vunpack.c.l.b16 %v199
        %v264 = vunpack.c.l.b16 %v200
        %v265 = vunpack.c.l.b16 %v201
        %v266 = vunpack.c.l.b16 %v202
        %v267 = vunpack.c.l.b16 %v203
        %v268 = vunpack.c.l.b16 %v204
        %v269 = vunpack.c.l.b16 %v205
        %v270 = vunpack.c.l.b16 %v206
        %v271 = vunpack.c.l.b16 %v207
        %v272 = vunpack.c.l.b16 %v208
        %v273 = vunpack.c.l.b16 %v209
        %v274 = vunpack.c.l.b16 %v210
        %v275 = vpack.c.b16 %v244, %v243
        %v276 = vpack.c.b16 %v246, %v245
        %v277 = vpack.c.b16 %v248, %v247
        %v278 = vpack.c.b16 %v250, %v249
        %v279 = vpack.c.b16 %v252, %v251
        %v280 = vpack.c.b16 %v254, %v253
        %v281 = vpack.c.b16 %v256, %v255
        %v282 = vpack.c.b16 %v258, %v257
        %v283 = vpack.c.b16 %v260, %v259
        %v284 = vpack.c.b16 %v262, %v261
        %v285 = vpack.c.b16 %v264, %v263
        %v286 = vpack.c.b16 %v266, %v265
        %v287 = vpack.c.b16 %v268, %v267
        %v288 = vpack.c.b16 %v270, %v269
        %v289 = vpack.c.b16 %v272, %v271
        %v290 = vpack.c.b16 %v274, %v273
        %vm291 = vcmask 261120
        %v293 = vsel %vm291, %v178, 0
        %v296 = vsel %vm291, %v275, 0
        %v299 = vsel %vm291, %v276, 0
        %v302 = vsel %vm291, %v277, 0
        %v305 = vsel %vm291, %v278, 0
        %v308 = vsel %vm291, %v279, 0
        %v311 = vsel %vm291, %v280, 0
        %v314 = vsel %vm291, %v281, 0
        %v317 = vsel %vm291, %v282, 0
        %v320 = vsel %vm291, %v283, 0
        %v323 = vsel %vm291, %v284, 0
        %v326 = vsel %vm291, %v285, 0
        %v329 = vsel %vm291, %v286, 0
        %v332 = vsel %vm291, %v287, 0
        %v335 = vsel %vm291, %v288, 0
        %v338 = vsel %vm291, %v289, 0
        %v341 = vsel %vm291, %v290, 0
        %343 = vmatprep.subr.bf16.mxu0 0
        %344 = vmatpush1.bf16.xpose.msra.mxu0 %v296
        %345 = vmatprep.subr.bf16.mxu0 0
        %346 = vmatpush1.bf16.xpose.msra.mxu0 %v299
        %347 = vmatprep.subr.bf16.mxu0 0
        %348 = vmatpush1.bf16.xpose.msra.mxu0 %v302
        %349 = vmatprep.subr.bf16.mxu0 0
        %350 = vmatpush1.bf16.xpose.msra.mxu0 %v305
        %351 = vmatprep.subr.bf16.mxu0 0
        %352 = vmatpush1.bf16.xpose.msra.mxu0 %v308
        %353 = vmatprep.subr.bf16.mxu0 0
        %354 = vmatpush1.bf16.xpose.msra.mxu0 %v311
        %355 = vmatprep.subr.bf16.mxu0 0
        %356 = vmatpush1.bf16.xpose.msra.mxu0 %v314
        %357 = vmatprep.subr.bf16.mxu0 0
        %358 = vmatpush1.bf16.xpose.msra.mxu0 %v317
        %359 = vmatprep.subr.bf16.mxu0 0
        %360 = vmatpush1.bf16.xpose.msra.mxu0 %v320
        %361 = vmatprep.subr.bf16.mxu0 0
        %362 = vmatpush1.bf16.xpose.msra.mxu0 %v323
        %363 = vmatprep.subr.bf16.mxu0 0
        %364 = vmatpush1.bf16.xpose.msra.mxu0 %v326
        %365 = vmatprep.subr.bf16.mxu0 0
        %366 = vmatpush1.bf16.xpose.msra.mxu0 %v329
        %367 = vmatprep.subr.bf16.mxu0 0
        %368 = vmatpush1.bf16.xpose.msra.mxu0 %v332
        %369 = vmatprep.subr.bf16.mxu0 0
        %370 = vmatpush1.bf16.xpose.msra.mxu0 %v335
        %371 = vmatprep.subr.bf16.mxu0 0
        %372 = vmatpush1.bf16.xpose.msra.mxu0 %v338
        %373 = vmatprep.subr.bf16.mxu0 0
        %374 = vmatpush1.bf16.xpose.msra.mxu0 %v341
        %375 = vmatprep.mubr.bf16.mxu0 0
        %376 = vmatmul.mubr.bf16.gmra.mrb[0].mxu0 %v293
        %v377 = vpop.f32.mrb[0].mxu0
        %v378 = vadd.f32 0.0, %v377
        %v379 = vpop.f32.mrb[0].mxu0
        %v380 = vadd.f32 0.0, %v379
        %v381 = vpop.f32.mrb[0].mxu0
        %v382 = vpop.f32.mrb[0].mxu0
        %383 = vdwg.mxu0
        %384 = vst [vmem:[%s164] sm:$0xff] %v378
        %385 = vst [vmem:[%s164 + $0x8] sm:$0xff] %v380
        %s386 = sand.u32 %s90, 1
        %s387 = scalar_lea.sflag [#allocation3], %s386
        %s388 = sand.u32 %s90, 1
        %s389 = smul.addr %s388, 16
        %s390 = scalar_lea.vmem [#allocation2], %s389
        // Predicated region
        $region29: #{production_transformer.5} parent=27 // pred_check
          %p391 = pneg %p100
        $region30: #{production_transformer.5} parent=27 // pred_check_branch
          %393 = sbr.rel (%p391) target = $region32
        $region31: #{production_transformer.5} parent=27 // pred_region
          %s394 = smul.u32 2, %s20
          %s396 = ssub.s32 256, 256
          %397 = vsyncadd %s387, %s396
          %s398 = smul.addr %s21, 2
          %s399 = sadd.s32 %s394, %s398
          %s400 = smul.addr %s399, 128
          %s401 = scalar_lea.hbm %s2, %s400
          %s403 = sshll.u32 %s390, 4
          %s404 = int_to_ptr.vmem [resolvable:$true] %s403
          %406 = dma.vmem_to_hbm [thread:$0]  %s404, 256, %s401, %s387
        $region32: #{production_transformer.5} parent=27 // pred_fallthru
          _
      $region28: #{production_transformer.5} parent=5 // pred_fallthru
        _
      %p407 = scmp.le.s32.totalorder 2, %s11
      // Predicated region
      $region33: #{production_transformer.5} parent=5 // pred_check
        %p408 = pneg %p407
      $region34: #{production_transformer.5} parent=5 // pred_check_branch
        %410 = sbr.rel (%p408) target = $region36
      $region35: #{production_transformer.5} parent=5 // pred_region
        %s411 = ssub.s32 %s11, 2
        // Predicated region
        $region37: #{production_transformer.5} parent=35 // pred_check
          %p412 = pneg %p106
        $region38: #{production_transformer.5} parent=35 // pred_check_branch
          %414 = sbr.rel (%p412) target = $region40
        $region39: #{production_transformer.5} parent=35 // pred_region
          %s415 = sand.u32 %s91, 1
          %s416 = scalar_lea.sflag [#allocation3], %s415
          %s417 = sand.u32 %s91, 1
          %s418 = smul.addr %s417, 16
          %s419 = scalar_lea.vmem [#allocation2], %s418
          %420 = dma.done %s416, 256
        $region40: #{production_transformer.5} parent=35 // pred_fallthru
          _
      $region36: #{production_transformer.5} parent=5 // pred_fallthru
        _
    $region6: #{production_transformer.5} parent=1 // loop_footer
      %s15 = sadd.s32 1, %s11
    $region7: #{production_transformer.5} parent=1 // loop_footer_branch
      %10 = sbr.rel target = $region3
    $region8: #{production_transformer.5} parent=1 // loop_exit
      _
    %421 = vsyncpa [#allocation3], 1
    %s422 = scalar_lea.sflag [#allocation3], 1
    %423 = vsyncpa %s422, 1

// kernel: production_transformer.3
$region0: #{production_transformer.3}
  #allocation0 [shape = 'u32[]', space=smem, size = 0x4, offset = 0x4, fixed_abs, tag = 'smem constant byte address 0x4 - core index']
  #allocation1 [shape = 'u32[144,128]{1,0:T(1,128)}', space=vmem, size = 0x12000, scoped, tag = 'internal scratch']
  %s0 = inlined_call_operand.hbm [shape: f32[2,8,32], index: 0, kind: input, shape index: {}]
  %s1 = inlined_call_operand.hbm [shape: bf16[96,32], index: 1, kind: input, shape index: {}]
  %s2 = inlined_call_operand.hbm [shape: f32[1,96], index: 2, kind: input, shape index: {}]
  %s3 = inlined_call_operand.hbm [shape: bf16[32,32], index: 3, kind: input, shape index: {}]
  %s4 = inlined_call_operand.hbm [shape: f32[1,32], index: 4, kind: input, shape index: {}]
  %s5 = inlined_call_operand.hbm [shape: f32[1,32], index: 5, kind: input, shape index: {}]
  %s6 = inlined_call_operand.hbm [shape: f32[1,32], index: 6, kind: input, shape index: {}]
  %s7 = inlined_call_operand.hbm [shape: bf16[64,32], index: 7, kind: input, shape index: {}]
  %s8 = inlined_call_operand.hbm [shape: f32[1,64], index: 8, kind: input, shape index: {}]
  %s9 = inlined_call_operand.hbm [shape: bf16[32,64], index: 9, kind: input, shape index: {}]
  %s10 = inlined_call_operand.hbm [shape: f32[1,32], index: 10, kind: input, shape index: {}]
  %s11 = inlined_call_operand.hbm [shape: f32[1,32], index: 11, kind: input, shape index: {}]
  %s12 = inlined_call_operand.hbm [shape: f32[1,32], index: 12, kind: input, shape index: {}]
  %s13 = inlined_call_operand.hbm [shape: f32[2,8,32], index: 13, kind: output, shape index: {}]
  %s14 = sld [smem:[#allocation0]]
  $region137: #{production_transformer.3} parent=0
    _
  %s16 = ssub.s32 1, %s14
  %s17 = scalar_select 0, %s16, %s14
  $region1: #{production_transformer.3} parent=0
    #allocation2 [shape = 'u8[8192]{0}', space=vmem, size = 0x2000, scoped, tag = 'input window, operand 0']
    #allocation3 [shape = 's32[2]{0}', space=sflag, size = 0x8, scoped, tag = 'scoped memory for production_transformer.3']
    #allocation4 [shape = 's32[2]{0}', space=sflag, size = 0x8, scoped, tag = 'scoped memory for production_transformer.3']
    #allocation5 [shape = 'u8[24576]{0}', space=vmem, size = 0x6000, scoped, tag = 'input window, operand 1, single buffered']
    #allocation6 [shape = 's32[1]{0}', space=sflag, size = 0x4, scoped, tag = 'scoped memory for production_transformer.3']
    #allocation7 [shape = 'u8[512]{0}', space=vmem, size = 0x400, scoped, tag = 'input window, operand 2, single buffered']
    #allocation8 [shape = 'u8[8192]{0}', space=vmem, size = 0x2000, scoped, tag = 'input window, operand 3, single buffered']
    #allocation9 [shape = 's32[1]{0}', space=sflag, size = 0x4, scoped, tag = 'scoped memory for production_transformer.3']
    #allocation10 [shape = 'u8[512]{0}', space=vmem, size = 0x400, scoped, tag = 'input window, operand 4, single buffered']
    #allocation11 [shape = 'u8[512]{0}', space=vmem, size = 0x400, scoped, tag = 'input window, operand 5, single buffered']
    #allocation12 [shape = 's32[1]{0}', space=sflag, size = 0x4, scoped, tag = 'scoped memory for production_transformer.3']
    #allocation13 [shape = 'u8[512]{0}', space=vmem, size = 0x400, scoped, tag = 'input window, operand 6, single buffered']
    #allocation14 [shape = 'u8[16384]{0}', space=vmem, size = 0x4000, scoped, tag = 'input window, operand 7, single buffered']
    #allocation15 [shape = 's32[1]{0}', space=sflag, size = 0x4, scoped, tag = 'scoped memory for production_transformer.3']
    #allocation16 [shape = 'u8[512]{0}', space=vmem, size = 0x400, scoped, tag = 'input window, operand 8, single buffered']
    #allocation17 [shape = 'u8[8192]{0}', space=vmem, size = 0x2000, scoped, tag = 'input window, operand 9, single buffered']
    #allocation18 [shape = 's32[1]{0}', space=sflag, size = 0x4, scoped, tag = 'scoped memory for production_transformer.3']
    #allocation19 [shape = 'u8[512]{0}', space=vmem, size = 0x400, scoped, tag = 'input window, operand 10, single buffered']
    #allocation20 [shape = 'u8[512]{0}', space=vmem, size = 0x400, scoped, tag = 'input window, operand 11, single buffered']
    #allocation21 [shape = 's32[1]{0}', space=sflag, size = 0x4, scoped, tag = 'scoped memory for production_transformer.3']
    #allocation22 [shape = 'u8[512]{0}', space=vmem, size = 0x400, scoped, tag = 'input window, operand 12, single buffered']
    #allocation23 [shape = 'u8[8192]{0}', space=vmem, size = 0x2000, scoped, tag = 'output window, operand 0']
    %18 = vsyncpa [#allocation3], 0
    %s19 = scalar_lea.sflag [#allocation3], 1
    %20 = vsyncpa %s19, 0
    %21 = vsyncpa [#allocation6], 0
    %22 = vsyncpa [#allocation9], 0
    %23 = vsyncpa [#allocation12], 0
    %24 = vsyncpa [#allocation15], 0
    %25 = vsyncpa [#allocation18], 0
    %26 = vsyncpa [#allocation21], 0
    %27 = vsyncpa [#allocation4], 0
    %s28 = scalar_lea.sflag [#allocation4], 1
    %29 = vsyncpa %s28, 0
    loop: start=0, step=1, limit=4
    $region2: #{production_transformer.3} parent=1 // loop_pre_header
      _
    $region3: #{production_transformer.3} parent=1 // loop_header
      %s31 = sphi 0, %s35
      %p32 = scmp.ge.s32.totalorder %s31, 4
      %s41 = sphi 0, %s43
      %s44 = sphi 0, %s41
      %s45 = sphi 0, %s44
      %s61 = sphi 0, %s45
      %s65 = sphi 0, %s65
      %s67 = sphi 0, %s65
      %s68 = sphi 0, %s67
      %s82 = sphi 0, %s68
      %s86 = sphi 0, %s86
      %s88 = sphi 0, %s86
      %s89 = sphi 0, %s88
      %s103 = sphi 0, %s89
      %s107 = sphi 0, %s107
      %s109 = sphi 0, %s107
      %s110 = sphi 0, %s109
      %s124 = sphi 0, %s110
      %s128 = sphi 0, %s128
      %s130 = sphi 0, %s128
      %s131 = sphi 0, %s130
      %s145 = sphi 0, %s131
      %s149 = sphi 0, %s149
      %s151 = sphi 0, %s149
      %s152 = sphi 0, %s151
      %s166 = sphi 0, %s152
      %s170 = sphi 0, %s170
      %s172 = sphi 0, %s170
      %s173 = sphi 0, %s172
      %s187 = sphi 0, %s173
      %s191 = sphi 0, %s191
      %s193 = sphi 0, %s191
      %s194 = sphi 0, %s193
      %s208 = sphi 0, %s194
      %s212 = sphi 0, %s212
      %s214 = sphi 0, %s212
      %s215 = sphi 0, %s214
      %s229 = sphi 0, %s215
      %s233 = sphi 0, %s233
      %s235 = sphi 0, %s233
      %s236 = sphi 0, %s235
      %s250 = sphi 0, %s236
      %s254 = sphi 0, %s254
      %s256 = sphi 0, %s254
      %s257 = sphi 0, %s256
      %s271 = sphi 0, %s257
      %s275 = sphi 0, %s275
      %s277 = sphi 0, %s275
      %s278 = sphi 0, %s277
      %s292 = sphi 0, %s278
      %s296 = sphi 0, %s296
      %s298 = sphi 0, %s296
      %s299 = sphi 0, %s298
      %s313 = sphi 0, %s299
      %s319 = sphi 0, %s321
      %s322 = sphi 0, %s319
      %s323 = sphi 0, %s322
      %s339 = sphi 0, %s323
    $region4: #{production_transformer.3} parent=1 // loop_header_branch
      %34 = sbr.rel (%p32) target = $region8
    $region5: #{production_transformer.3} parent=1 // loop_body
      %s36 = ssub.s32 %s31, 1
      %s37 = ssub.s32 %s31, 2
      %s38 = sadd.s32 %s31, 1
      %s39 = ssub.s32 %s31, %s38
      %p40 = scmp.eq.s32.totalorder %s39, 0
      %s42 = sadd.s32 %s41, 1
      %s43 = scalar_select %p40, %s41, %s42
      %p46 = pneg %p40
      %p47 = scmp.eq.s32.totalorder %s31, 1
      %p48 = por %p46, %p47
      %p49 = scmp.ne.s32.totalorder %s41, %s44
      %p50 = scmp.eq.s32.totalorder %s31, 0
      %p51 = por %p49, %p50
      %p52 = scmp.ne.s32.totalorder %s41, %s44
      %p53 = scmp.eq.s32.totalorder %s36, 1
      %p54 = por %p52, %p53
      %p55 = scmp.ne.s32.totalorder %s44, %s45
      %p56 = scmp.eq.s32.totalorder %s36, 0
      %p57 = por %p55, %p56
      %p58 = scmp.ne.s32.totalorder %s44, %s45
      %p59 = scmp.eq.s32.totalorder %s37, 1
      %p60 = por %p58, %p59
      %p62 = scmp.ne.s32.totalorder %s45, %s61
      %p63 = scmp.eq.s32.totalorder %s37, 0
      %p64 = por %p62, %p63
      %s66 = sadd.s32 %s65, 1
      %p69 = scmp.eq.s32.totalorder %s31, 1
      %p70 = scmp.ne.s32.totalorder %s65, %s67
      %p71 = scmp.eq.s32.totalorder %s31, 0
      %p72 = por %p70, %p71
      %p73 = scmp.ne.s32.totalorder %s65, %s67
      %p74 = scmp.eq.s32.totalorder %s36, 1
      %p75 = por %p73, %p74
      %p76 = scmp.ne.s32.totalorder %s67, %s68
      %p77 = scmp.eq.s32.totalorder %s36, 0
      %p78 = por %p76, %p77
      %p79 = scmp.ne.s32.totalorder %s67, %s68
      %p80 = scmp.eq.s32.totalorder %s37, 1
      %p81 = por %p79, %p80
      %p83 = scmp.ne.s32.totalorder %s68, %s82
      %p84 = scmp.eq.s32.totalorder %s37, 0
      %p85 = por %p83, %p84
      %s87 = sadd.s32 %s86, 1
      %p90 = scmp.eq.s32.totalorder %s31, 1
      %p91 = scmp.ne.s32.totalorder %s86, %s88
      %p92 = scmp.eq.s32.totalorder %s31, 0
      %p93 = por %p91, %p92
      %p94 = scmp.ne.s32.totalorder %s86, %s88
      %p95 = scmp.eq.s32.totalorder %s36, 1
      %p96 = por %p94, %p95
      %p97 = scmp.ne.s32.totalorder %s88, %s89
      %p98 = scmp.eq.s32.totalorder %s36, 0
      %p99 = por %p97, %p98
      %p100 = scmp.ne.s32.totalorder %s88, %s89
      %p101 = scmp.eq.s32.totalorder %s37, 1
      %p102 = por %p100, %p101
      %p104 = scmp.ne.s32.totalorder %s89, %s103
      %p105 = scmp.eq.s32.totalorder %s37, 0
      %p106 = por %p104, %p105
      %s108 = sadd.s32 %s107, 1
      %p111 = scmp.eq.s32.totalorder %s31, 1
      %p112 = scmp.ne.s32.totalorder %s107, %s109
      %p113 = scmp.eq.s32.totalorder %s31, 0
      %p114 = por %p112, %p113
      %p115 = scmp.ne.s32.totalorder %s107, %s109
      %p116 = scmp.eq.s32.totalorder %s36, 1
      %p117 = por %p115, %p116
      %p118 = scmp.ne.s32.totalorder %s109, %s110
      %p119 = scmp.eq.s32.totalorder %s36, 0
      %p120 = por %p118, %p119
      %p121 = scmp.ne.s32.totalorder %s109, %s110
      %p122 = scmp.eq.s32.totalorder %s37, 1
      %p123 = por %p121, %p122
      %p125 = scmp.ne.s32.totalorder %s110, %s124
      %p126 = scmp.eq.s32.totalorder %s37, 0
      %p127 = por %p125, %p126
      %s129 = sadd.s32 %s128, 1
      %p132 = scmp.eq.s32.totalorder %s31, 1
      %p133 = scmp.ne.s32.totalorder %s128, %s130
      %p134 = scmp.eq.s32.totalorder %s31, 0
      %p135 = por %p133, %p134
      %p136 = scmp.ne.s32.totalorder %s128, %s130
      %p137 = scmp.eq.s32.totalorder %s36, 1
      %p138 = por %p136, %p137
      %p139 = scmp.ne.s32.totalorder %s130, %s131
      %p140 = scmp.eq.s32.totalorder %s36, 0
      %p141 = por %p139, %p140
      %p142 = scmp.ne.s32.totalorder %s130, %s131
      %p143 = scmp.eq.s32.totalorder %s37, 1
      %p144 = por %p142, %p143
      %p146 = scmp.ne.s32.totalorder %s131, %s145
      %p147 = scmp.eq.s32.totalorder %s37, 0
      %p148 = por %p146, %p147
      %s150 = sadd.s32 %s149, 1
      %p153 = scmp.eq.s32.totalorder %s31, 1
      %p154 = scmp.ne.s32.totalorder %s149, %s151
      %p155 = scmp.eq.s32.totalorder %s31, 0
      %p156 = por %p154, %p155
      %p157 = scmp.ne.s32.totalorder %s149, %s151
      %p158 = scmp.eq.s32.totalorder %s36, 1
      %p159 = por %p157, %p158
      %p160 = scmp.ne.s32.totalorder %s151, %s152
      %p161 = scmp.eq.s32.totalorder %s36, 0
      %p162 = por %p160, %p161
      %p163 = scmp.ne.s32.totalorder %s151, %s152
      %p164 = scmp.eq.s32.totalorder %s37, 1
      %p165 = por %p163, %p164
      %p167 = scmp.ne.s32.totalorder %s152, %s166
      %p168 = scmp.eq.s32.totalorder %s37, 0
      %p169 = por %p167, %p168
      %s171 = sadd.s32 %s170, 1
      %p174 = scmp.eq.s32.totalorder %s31, 1
      %p175 = scmp.ne.s32.totalorder %s170, %s172
      %p176 = scmp.eq.s32.totalorder %s31, 0
      %p177 = por %p175, %p176
      %p178 = scmp.ne.s32.totalorder %s170, %s172
      %p179 = scmp.eq.s32.totalorder %s36, 1
      %p180 = por %p178, %p179
      %p181 = scmp.ne.s32.totalorder %s172, %s173
      %p182 = scmp.eq.s32.totalorder %s36, 0
      %p183 = por %p181, %p182
      %p184 = scmp.ne.s32.totalorder %s172, %s173
      %p185 = scmp.eq.s32.totalorder %s37, 1
      %p186 = por %p184, %p185
      %p188 = scmp.ne.s32.totalorder %s173, %s187
      %p189 = scmp.eq.s32.totalorder %s37, 0
      %p190 = por %p188, %p189
      %s192 = sadd.s32 %s191, 1
      %p195 = scmp.eq.s32.totalorder %s31, 1
      %p196 = scmp.ne.s32.totalorder %s191, %s193
      %p197 = scmp.eq.s32.totalorder %s31, 0
      %p198 = por %p196, %p197
      %p199 = scmp.ne.s32.totalorder %s191, %s193
      %p200 = scmp.eq.s32.totalorder %s36, 1
      %p201 = por %p199, %p200
      %p202 = scmp.ne.s32.totalorder %s193, %s194
      %p203 = scmp.eq.s32.totalorder %s36, 0
      %p204 = por %p202, %p203
      %p205 = scmp.ne.s32.totalorder %s193, %s194
      %p206 = scmp.eq.s32.totalorder %s37, 1
      %p207 = por %p205, %p206
      %p209 = scmp.ne.s32.totalorder %s194, %s208
      %p210 = scmp.eq.s32.totalorder %s37, 0
      %p211 = por %p209, %p210
      %s213 = sadd.s32 %s212, 1
      %p216 = scmp.eq.s32.totalorder %s31, 1
      %p217 = scmp.ne.s32.totalorder %s212, %s214
      %p218 = scmp.eq.s32.totalorder %s31, 0
      %p219 = por %p217, %p218
      %p220 = scmp.ne.s32.totalorder %s212, %s214
      %p221 = scmp.eq.s32.totalorder %s36, 1
      %p222 = por %p220, %p221
      %p223 = scmp.ne.s32.totalorder %s214, %s215
      %p224 = scmp.eq.s32.totalorder %s36, 0
      %p225 = por %p223, %p224
      %p226 = scmp.ne.s32.totalorder %s214, %s215
      %p227 = scmp.eq.s32.totalorder %s37, 1
      %p228 = por %p226, %p227
      %p230 = scmp.ne.s32.totalorder %s215, %s229
      %p231 = scmp.eq.s32.totalorder %s37, 0
      %p232 = por %p230, %p231
      %s234 = sadd.s32 %s233, 1
      %p237 = scmp.eq.s32.totalorder %s31, 1
      %p238 = scmp.ne.s32.totalorder %s233, %s235
      %p239 = scmp.eq.s32.totalorder %s31, 0
      %p240 = por %p238, %p239
      %p241 = scmp.ne.s32.totalorder %s233, %s235
      %p242 = scmp.eq.s32.totalorder %s36, 1
      %p243 = por %p241, %p242
      %p244 = scmp.ne.s32.totalorder %s235, %s236
      %p245 = scmp.eq.s32.totalorder %s36, 0
      %p246 = por %p244, %p245
      %p247 = scmp.ne.s32.totalorder %s235, %s236
      %p248 = scmp.eq.s32.totalorder %s37, 1
      %p249 = por %p247, %p248
      %p251 = scmp.ne.s32.totalorder %s236, %s250
      %p252 = scmp.eq.s32.totalorder %s37, 0
      %p253 = por %p251, %p252
      %s255 = sadd.s32 %s254, 1
      %p258 = scmp.eq.s32.totalorder %s31, 1
      %p259 = scmp.ne.s32.totalorder %s254, %s256
      %p260 = scmp.eq.s32.totalorder %s31, 0
      %p261 = por %p259, %p260
      %p262 = scmp.ne.s32.totalorder %s254, %s256
      %p263 = scmp.eq.s32.totalorder %s36, 1
      %p264 = por %p262, %p263
      %p265 = scmp.ne.s32.totalorder %s256, %s257
      %p266 = scmp.eq.s32.totalorder %s36, 0
      %p267 = por %p265, %p266
      %p268 = scmp.ne.s32.totalorder %s256, %s257
      %p269 = scmp.eq.s32.totalorder %s37, 1
      %p270 = por %p268, %p269
      %p272 = scmp.ne.s32.totalorder %s257, %s271
      %p273 = scmp.eq.s32.totalorder %s37, 0
      %p274 = por %p272, %p273
      %s276 = sadd.s32 %s275, 1
      %p279 = scmp.eq.s32.totalorder %s31, 1
      %p280 = scmp.ne.s32.totalorder %s275, %s277
      %p281 = scmp.eq.s32.totalorder %s31, 0
      %p282 = por %p280, %p281
      %p283 = scmp.ne.s32.totalorder %s275, %s277
      %p284 = scmp.eq.s32.totalorder %s36, 1
      %p285 = por %p283, %p284
      %p286 = scmp.ne.s32.totalorder %s277, %s278
      %p287 = scmp.eq.s32.totalorder %s36, 0
      %p288 = por %p286, %p287
      %p289 = scmp.ne.s32.totalorder %s277, %s278
      %p290 = scmp.eq.s32.totalorder %s37, 1
      %p291 = por %p289, %p290
      %p293 = scmp.ne.s32.totalorder %s278, %s292
      %p294 = scmp.eq.s32.totalorder %s37, 0
      %p295 = por %p293, %p294
      %s297 = sadd.s32 %s296, 1
      %p300 = scmp.eq.s32.totalorder %s31, 1
      %p301 = scmp.ne.s32.totalorder %s296, %s298
      %p302 = scmp.eq.s32.totalorder %s31, 0
      %p303 = por %p301, %p302
      %p304 = scmp.ne.s32.totalorder %s296, %s298
      %p305 = scmp.eq.s32.totalorder %s36, 1
      %p306 = por %p304, %p305
      %p307 = scmp.ne.s32.totalorder %s298, %s299
      %p308 = scmp.eq.s32.totalorder %s36, 0
      %p309 = por %p307, %p308
      %p310 = scmp.ne.s32.totalorder %s298, %s299
      %p311 = scmp.eq.s32.totalorder %s37, 1
      %p312 = por %p310, %p311
      %p314 = scmp.ne.s32.totalorder %s299, %s313
      %p315 = scmp.eq.s32.totalorder %s37, 0
      %p316 = por %p314, %p315
      %s317 = ssub.s32 %s31, %s38
      %p318 = scmp.eq.s32.totalorder %s317, 0
      %s320 = sadd.s32 %s319, 1
      %s321 = scalar_select %p318, %s319, %s320
      %p324 = pneg %p318
      %p325 = scmp.eq.s32.totalorder %s31, 1
      %p326 = por %p324, %p325
      %p327 = scmp.ne.s32.totalorder %s319, %s322
      %p328 = scmp.eq.s32.totalorder %s31, 0
      %p329 = por %p327, %p328
      %p330 = scmp.ne.s32.totalorder %s319, %s322
      %p331 = scmp.eq.s32.totalorder %s36, 1
      %p332 = por %p330, %p331
      %p333 = scmp.ne.s32.totalorder %s322, %s323
      %p334 = scmp.eq.s32.totalorder %s36, 0
      %p335 = por %p333, %p334
      %p336 = scmp.ne.s32.totalorder %s322, %s323
      %p337 = scmp.eq.s32.totalorder %s37, 1
      %p338 = por %p336, %p337
      %p340 = scmp.ne.s32.totalorder %s323, %s339
      %p341 = scmp.eq.s32.totalorder %s37, 0
      %p342 = por %p340, %p341
      %p343 = scmp.le.s32.totalorder 1, %s31
      %p344 = scmp.lt.s32.totalorder %s31, 3
      %p345 = pnand %p343, %p344
      %p346 = pneg %p345
      // Predicated region
      $region9: #{production_transformer.3} parent=5 // pred_check
        _
      $region10: #{production_transformer.3} parent=5 // pred_check_branch
        %348 = sbr.rel (%p345) target = $region12
      $region11: #{production_transformer.3} parent=5 // pred_region
        %s349 = ssub.s32 %s31, 1
        // Predicated region
        $region13: #{production_transformer.3} parent=11 // pred_check
          %p350 = pneg %p78
        $region14: #{production_transformer.3} parent=11 // pred_check_branch
          %352 = sbr.rel (%p350) target = $region16
        $region15: #{production_transformer.3} parent=11 // pred_region
          %s354 = ssub.s32 768, 768
          %355 = vsyncadd [#allocation6], %s354
          %s356 = sshll.u32 [#allocation5], 4
          %s357 = int_to_ptr.vmem [resolvable:$true] %s356
          %362 = dma.hbm_to_vmem [thread:$0]  %s1, 768, %s357, [#allocation6], 64, 64, 4
        $region16: #{production_transformer.3} parent=11 // pred_fallthru
          _
        // Predicated region
        $region17: #{production_transformer.3} parent=11 // pred_check
          %p363 = pneg %p99
        $region18: #{production_transformer.3} parent=11 // pred_check_branch
          %365 = sbr.rel (%p363) target = $region20
        $region19: #{production_transformer.3} parent=11 // pred_region
          %s367 = ssub.s32 16, 16
          %368 = vsyncadd [#allocation6], %s367
          %s370 = sshll.u32 [#allocation7], 4
          %s371 = int_to_ptr.vmem [resolvable:$true] %s370
          %373 = dma.hbm_to_vmem [thread:$0]  %s2, 16, %s371, [#allocation6]
        $region20: #{production_transformer.3} parent=11 // pred_fallthru
          _
        // Predicated region
        $region21: #{production_transformer.3} parent=11 // pred_check
          %p374 = pneg %p120
        $region22: #{production_transformer.3} parent=11 // pred_check_branch
          %376 = sbr.rel (%p374) target = $region24
        $region23: #{production_transformer.3} parent=11 // pred_region
          %s378 = ssub.s32 256, 256
          %379 = vsyncadd [#allocation9], %s378
          %s380 = sshll.u32 [#allocation8], 4
          %s381 = int_to_ptr.vmem [resolvable:$true] %s380
          %386 = dma.hbm_to_vmem [thread:$0]  %s3, 256, %s381, [#allocation9], 64, 64, 4
        $region24: #{production_transformer.3} parent=11 // pred_fallthru
          _
        // Predicated region
        $region25: #{production_transformer.3} parent=11 // pred_check
          %p387 = pneg %p141
        $region26: #{production_transformer.3} parent=11 // pred_check_branch
          %389 = sbr.rel (%p387) target = $region28
        $region27: #{production_transformer.3} parent=11 // pred_region
          %s391 = ssub.s32 16, 16
          %392 = vsyncadd [#allocation9], %s391
          %s394 = sshll.u32 [#allocation10], 4
          %s395 = int_to_ptr.vmem [resolvable:$true] %s394
          %397 = dma.hbm_to_vmem [thread:$0]  %s4, 16, %s395, [#allocation9]
        $region28: #{production_transformer.3} parent=11 // pred_fallthru
          _
        // Predicated region
        $region29: #{production_transformer.3} parent=11 // pred_check
          %p398 = pneg %p162
        $region30: #{production_transformer.3} parent=11 // pred_check_branch
          %400 = sbr.rel (%p398) target = $region32
        $region31: #{production_transformer.3} parent=11 // pred_region
          %s402 = ssub.s32 16, 16
          %403 = vsyncadd [#allocation12], %s402
          %s405 = sshll.u32 [#allocation11], 4
          %s406 = int_to_ptr.vmem [resolvable:$true] %s405
          %408 = dma.hbm_to_vmem [thread:$0]  %s5, 16, %s406, [#allocation12]
        $region32: #{production_transformer.3} parent=11 // pred_fallthru
          _
        // Predicated region
        $region33: #{production_transformer.3} parent=11 // pred_check
          %p409 = pneg %p183
        $region34: #{production_transformer.3} parent=11 // pred_check_branch
          %411 = sbr.rel (%p409) target = $region36
        $region35: #{production_transformer.3} parent=11 // pred_region
          %s413 = ssub.s32 16, 16
          %414 = vsyncadd [#allocation12], %s413
          %s416 = sshll.u32 [#allocation13], 4
          %s417 = int_to_ptr.vmem [resolvable:$true] %s416
          %419 = dma.hbm_to_vmem [thread:$0]  %s6, 16, %s417, [#allocation12]
        $region36: #{production_transformer.3} parent=11 // pred_fallthru
          _
        // Predicated region
        $region37: #{production_transformer.3} parent=11 // pred_check
          %p420 = pneg %p204
        $region38: #{production_transformer.3} parent=11 // pred_check_branch
          %422 = sbr.rel (%p420) target = $region40
        $region39: #{production_transformer.3} parent=11 // pred_region
          %s424 = ssub.s32 512, 512
          %425 = vsyncadd [#allocation15], %s424
          %s426 = sshll.u32 [#allocation14], 4
          %s427 = int_to_ptr.vmem [resolvable:$true] %s426
          %432 = dma.hbm_to_vmem [thread:$0]  %s7, 512, %s427, [#allocation15], 64, 64, 4
        $region40: #{production_transformer.3} parent=11 // pred_fallthru
          _
        // Predicated region
        $region41: #{production_transformer.3} parent=11 // pred_check
          %p433 = pneg %p225
        $region42: #{production_transformer.3} parent=11 // pred_check_branch
          %435 = sbr.rel (%p433) target = $region44
        $region43: #{production_transformer.3} parent=11 // pred_region
          %s437 = ssub.s32 16, 16
          %438 = vsyncadd [#allocation15], %s437
          %s440 = sshll.u32 [#allocation16], 4
          %s441 = int_to_ptr.vmem [resolvable:$true] %s440
          %443 = dma.hbm_to_vmem [thread:$0]  %s8, 16, %s441, [#allocation15]
        $region44: #{production_transformer.3} parent=11 // pred_fallthru
          _
        // Predicated region
        $region45: #{production_transformer.3} parent=11 // pred_check
          %p444 = pneg %p246
        $region46: #{production_transformer.3} parent=11 // pred_check_branch
          %446 = sbr.rel (%p444) target = $region48
        $region47: #{production_transformer.3} parent=11 // pred_region
          %s448 = ssub.s32 256, 256
          %449 = vsyncadd [#allocation18], %s448
          %s450 = sshll.u32 [#allocation17], 4
          %s451 = int_to_ptr.vmem [resolvable:$true] %s450
          %456 = dma.hbm_to_vmem [thread:$0]  %s9, 256, %s451, [#allocation18], 64, 64, 4
        $region48: #{production_transformer.3} parent=11 // pred_fallthru
          _
        // Predicated region
        $region49: #{production_transformer.3} parent=11 // pred_check
          %p457 = pneg %p267
        $region50: #{production_transformer.3} parent=11 // pred_check_branch
          %459 = sbr.rel (%p457) target = $region52
        $region51: #{production_transformer.3} parent=11 // pred_region
          %s461 = ssub.s32 16, 16
          %462 = vsyncadd [#allocation18], %s461
          %s464 = sshll.u32 [#allocation19], 4
          %s465 = int_to_ptr.vmem [resolvable:$true] %s464
          %467 = dma.hbm_to_vmem [thread:$0]  %s10, 16, %s465, [#allocation18]
        $region52: #{production_transformer.3} parent=11 // pred_fallthru
          _
        // Predicated region
        $region53: #{production_transformer.3} parent=11 // pred_check
          %p468 = pneg %p288
        $region54: #{production_transformer.3} parent=11 // pred_check_branch
          %470 = sbr.rel (%p468) target = $region56
        $region55: #{production_transformer.3} parent=11 // pred_region
          %s472 = ssub.s32 16, 16
          %473 = vsyncadd [#allocation21], %s472
          %s475 = sshll.u32 [#allocation20], 4
          %s476 = int_to_ptr.vmem [resolvable:$true] %s475
          %478 = dma.hbm_to_vmem [thread:$0]  %s11, 16, %s476, [#allocation21]
        $region56: #{production_transformer.3} parent=11 // pred_fallthru
          _
        // Predicated region
        $region57: #{production_transformer.3} parent=11 // pred_check
          %p479 = pneg %p309
        $region58: #{production_transformer.3} parent=11 // pred_check_branch
          %481 = sbr.rel (%p479) target = $region60
        $region59: #{production_transformer.3} parent=11 // pred_region
          %s483 = ssub.s32 16, 16
          %484 = vsyncadd [#allocation21], %s483
          %s486 = sshll.u32 [#allocation22], 4
          %s487 = int_to_ptr.vmem [resolvable:$true] %s486
          %489 = dma.hbm_to_vmem [thread:$0]  %s12, 16, %s487, [#allocation21]
        $region60: #{production_transformer.3} parent=11 // pred_fallthru
          _
      $region12: #{production_transformer.3} parent=5 // pred_fallthru
        _
      %p490 = scmp.lt.s32.totalorder %s31, 2
      // Predicated region
      $region61: #{production_transformer.3} parent=5 // pred_check
        %p491 = pneg %p490
      $region62: #{production_transformer.3} parent=5 // pred_check_branch
        %493 = sbr.rel (%p491) target = $region64
      $region63: #{production_transformer.3} parent=5 // pred_region
        // Predicated region
        $region65: #{production_transformer.3} parent=63 // pred_check
          %p494 = pneg %p51
        $region66: #{production_transformer.3} parent=63 // pred_check_branch
          %496 = sbr.rel (%p494) target = $region68
        $region67: #{production_transformer.3} parent=63 // pred_region
          %s497 = sand.u32 %s41, 1
          %s498 = scalar_lea.sflag [#allocation3], %s497
          %s499 = sand.u32 %s41, 1
          %s500 = smul.addr %s499, 8
          %s501 = scalar_lea.vmem [#allocation2], %s500
          %s503 = ssub.s32 128, 128
          %504 = vsyncadd %s498, %s503
          %s505 = smul.addr %s31, 128
          %s506 = scalar_lea.hbm %s0, %s505
          %s508 = sshll.u32 %s501, 4
          %s509 = int_to_ptr.vmem [resolvable:$true] %s508
          %511 = dma.hbm_to_vmem [thread:$0]  %s506, 128, %s509, %s498
        $region68: #{production_transformer.3} parent=63 // pred_fallthru
          _
      $region64: #{production_transformer.3} parent=5 // pred_fallthru
        _
      %p512 = scmp.le.s32.totalorder 1, %s31
      %p513 = scmp.lt.s32.totalorder %s31, 3
      %p514 = pnand %p512, %p513
      %p515 = pneg %p514
      // Predicated region
      $region69: #{production_transformer.3} parent=5 // pred_check
        _
      $region70: #{production_transformer.3} parent=5 // pred_check_branch
        %517 = sbr.rel (%p514) target = $region72
      $region71: #{production_transformer.3} parent=5 // pred_region
        %s518 = ssub.s32 %s31, 1
        %s519 = sand.u32 %s44, 1
        %s520 = scalar_lea.sflag [#allocation3], %s519
        %s521 = sand.u32 %s44, 1
        %s522 = smul.addr %s521, 8
        %s523 = scalar_lea.vmem [#allocation2], %s522
        // Predicated region
        $region73: #{production_transformer.3} parent=71 // pred_check
          %p524 = pneg %p57
        $region74: #{production_transformer.3} parent=71 // pred_check_branch
          %526 = sbr.rel (%p524) target = $region76
        $region75: #{production_transformer.3} parent=71 // pred_region
          %527 = dma.done %s520, 128
        $region76: #{production_transformer.3} parent=71 // pred_fallthru
          _
        // Predicated region
        $region77: #{production_transformer.3} parent=71 // pred_check
          %p528 = pneg %p78
        $region78: #{production_transformer.3} parent=71 // pred_check_branch
          %530 = sbr.rel (%p528) target = $region80
        $region79: #{production_transformer.3} parent=71 // pred_region
          %531 = dma.done [#allocation6], 768
        $region80: #{production_transformer.3} parent=71 // pred_fallthru
          _
        // Predicated region
        $region81: #{production_transformer.3} parent=71 // pred_check
          %p532 = pneg %p99
        $region82: #{production_transformer.3} parent=71 // pred_check_branch
          %534 = sbr.rel (%p532) target = $region84
        $region83: #{production_transformer.3} parent=71 // pred_region
          %535 = dma.done [#allocation6], 16
        $region84: #{production_transformer.3} parent=71 // pred_fallthru
          _
        // Predicated region
        $region85: #{production_transformer.3} parent=71 // pred_check
          %p536 = pneg %p120
        $region86: #{production_transformer.3} parent=71 // pred_check_branch
          %538 = sbr.rel (%p536) target = $region88
        $region87: #{production_transformer.3} parent=71 // pred_region
          %539 = dma.done [#allocation9], 256
        $region88: #{production_transformer.3} parent=71 // pred_fallthru
          _
        // Predicated region
        $region89: #{production_transformer.3} parent=71 // pred_check
          %p540 = pneg %p141
        $region90: #{production_transformer.3} parent=71 // pred_check_branch
          %542 = sbr.rel (%p540) target = $region92
        $region91: #{production_transformer.3} parent=71 // pred_region
          %543 = dma.done [#allocation9], 16
        $region92: #{production_transformer.3} parent=71 // pred_fallthru
          _
        // Predicated region
        $region93: #{production_transformer.3} parent=71 // pred_check
          %p544 = pneg %p162
        $region94: #{production_transformer.3} parent=71 // pred_check_branch
          %546 = sbr.rel (%p544) target = $region96
        $region95: #{production_transformer.3} parent=71 // pred_region
          %547 = dma.done [#allocation12], 16
        $region96: #{production_transformer.3} parent=71 // pred_fallthru
          _
        // Predicated region
        $region97: #{production_transformer.3} parent=71 // pred_check
          %p548 = pneg %p183
        $region98: #{production_transformer.3} parent=71 // pred_check_branch
          %550 = sbr.rel (%p548) target = $region100
        $region99: #{production_transformer.3} parent=71 // pred_region
          %551 = dma.done [#allocation12], 16
        $region100: #{production_transformer.3} parent=71 // pred_fallthru
          _
        // Predicated region
        $region101: #{production_transformer.3} parent=71 // pred_check
          %p552 = pneg %p204
        $region102: #{production_transformer.3} parent=71 // pred_check_branch
          %554 = sbr.rel (%p552) target = $region104
        $region103: #{production_transformer.3} parent=71 // pred_region
          %555 = dma.done [#allocation15], 512
        $region104: #{production_transformer.3} parent=71 // pred_fallthru
          _
        // Predicated region
        $region105: #{production_transformer.3} parent=71 // pred_check
          %p556 = pneg %p225
        $region106: #{production_transformer.3} parent=71 // pred_check_branch
          %558 = sbr.rel (%p556) target = $region108
        $region107: #{production_transformer.3} parent=71 // pred_region
          %559 = dma.done [#allocation15], 16
        $region108: #{production_transformer.3} parent=71 // pred_fallthru
          _
        // Predicated region
        $region109: #{production_transformer.3} parent=71 // pred_check
          %p560 = pneg %p246
        $region110: #{production_transformer.3} parent=71 // pred_check_branch
          %562 = sbr.rel (%p560) target = $region112
        $region111: #{production_transformer.3} parent=71 // pred_region
          %563 = dma.done [#allocation18], 256
        $region112: #{production_transformer.3} parent=71 // pred_fallthru
          _
        // Predicated region
        $region113: #{production_transformer.3} parent=71 // pred_check
          %p564 = pneg %p267
        $region114: #{production_transformer.3} parent=71 // pred_check_branch
          %566 = sbr.rel (%p564) target = $region116
        $region115: #{production_transformer.3} parent=71 // pred_region
          %567 = dma.done [#allocation18], 16
        $region116: #{production_transformer.3} parent=71 // pred_fallthru
          _
        // Predicated region
        $region117: #{production_transformer.3} parent=71 // pred_check
          %p568 = pneg %p288
        $region118: #{production_transformer.3} parent=71 // pred_check_branch
          %570 = sbr.rel (%p568) target = $region120
        $region119: #{production_transformer.3} parent=71 // pred_region
          %571 = dma.done [#allocation21], 16
        $region120: #{production_transformer.3} parent=71 // pred_fallthru
          _
        // Predicated region
        $region121: #{production_transformer.3} parent=71 // pred_check
          %p572 = pneg %p309
        $region122: #{production_transformer.3} parent=71 // pred_check_branch
          %574 = sbr.rel (%p572) target = $region124
        $region123: #{production_transformer.3} parent=71 // pred_region
          %575 = dma.done [#allocation21], 16
        $region124: #{production_transformer.3} parent=71 // pred_fallthru
          _
        %s576 = sand.u32 %s44, 1
        %s577 = scalar_lea.sflag [#allocation3], %s576
        %s578 = sand.u32 %s44, 1
        %s579 = smul.addr %s578, 8
        %s580 = scalar_lea.vmem [#allocation2], %s579
        %p581 = pneg %p57
        %p582 = pneg %p54
        %p583 = pneg %p78
        %p584 = pneg %p75
        %p585 = pneg %p99
        %p586 = pneg %p96
        %p587 = pneg %p120
        %p588 = pneg %p117
        %p589 = pneg %p141
        %p590 = pneg %p138
        %p591 = pneg %p162
        %p592 = pneg %p159
        %p593 = pneg %p183
        %p594 = pneg %p180
        %p595 = pneg %p204
        %p596 = pneg %p201
        %p597 = pneg %p225
        %p598 = pneg %p222
        %p599 = pneg %p246
        %p600 = pneg %p243
        %p601 = pneg %p267
        %p602 = pneg %p264
        %p603 = pneg %p288
        %p604 = pneg %p285
        %p605 = pneg %p309
        %p606 = pneg %p306
        %p607 = pneg %p335
        %p608 = pneg %p332
        %s609 = sand.u32 %s322, 1
        %s610 = scalar_lea.sflag [#allocation4], %s609
        %s611 = sand.u32 %s322, 1
        %s612 = smul.addr %s611, 8
        %s613 = scalar_lea.vmem [#allocation23], %s612
        %v615 = vld [vmem:[%s523] sm:$0xff]
        %v616 = vpack.c.bf16 %v615, %v615
        %v617 = vld [vmem:[#allocation5] sm:$0xf]
        %v618 = vld [vmem:[#allocation5 + $0x4] sm:$0xf]
        %v619 = vld [vmem:[#allocation5 + $0x8] sm:$0xf]
        %v620 = vld [vmem:[#allocation5 + $0xc] sm:$0xf]
        %v621 = vld [vmem:[#allocation5 + $0x10] sm:$0xf]
        %v622 = vld [vmem:[#allocation5 + $0x14] sm:$0xf]
        %v623 = vld [vmem:[#allocation5 + $0x18] sm:$0xf]
        %v624 = vld [vmem:[#allocation5 + $0x1c] sm:$0xf]
        %v625 = vld [vmem:[#allocation5 + $0x20] sm:$0xf]
        %v626 = vld [vmem:[#allocation5 + $0x24] sm:$0xf]
        %v627 = vld [vmem:[#allocation5 + $0x28] sm:$0xf]
        %v628 = vld [vmem:[#allocation5 + $0x2c] sm:$0xf]
        %v629 = vld [vmem:[#allocation7] sm:$0x1]
        %v631 = vlaneseq
        %v632 = vshrl.u32 %v631, 7
        %v633 = vsub.s32 0, %v632
        %v634 = vrot.slane %v629, %v633
        %v648 = vunpack.c.l.b16 %v617
        %v649 = vunpack.c.l.b16 %v618
        %v650 = vunpack.c.l.b16 %v619
        %v651 = vunpack.c.l.b16 %v620
        %v652 = vunpack.c.l.b16 %v621
        %v653 = vunpack.c.l.b16 %v622
        %v654 = vunpack.c.l.b16 %v623
        %v655 = vunpack.c.l.b16 %v624
        %v656 = vunpack.c.l.b16 %v625
        %v657 = vunpack.c.l.b16 %v626
        %v658 = vunpack.c.l.b16 %v627
        %v659 = vunpack.c.l.b16 %v628
        %v660 = vpack.c.b16 %v649, %v648
        %v661 = vpack.c.b16 %v651, %v650
        %v662 = vpack.c.b16 %v653, %v652
        %v663 = vpack.c.b16 %v655, %v654
        %v664 = vpack.c.b16 %v657, %v656
        %v665 = vpack.c.b16 %v659, %v658
        %vm666 = vcmask 261120
        %v668 = vsel %vm666, %v616, 0
        %v671 = vsel %vm666, %v660, 0
        %v674 = vsel %vm666, %v661, 0
        %v677 = vsel %vm666, %v662, 0
        %v680 = vsel %vm666, %v663, 0
        %v683 = vsel %vm666, %v664, 0
        %v686 = vsel %vm666, %v665, 0
        %688 = vmatprep.subr.bf16.mxu0 0
        %689 = vmatpush1.bf16.xpose.msra.mxu0 %v671
        %690 = vmatprep.subr.bf16.mxu0 0
        %691 = vmatpush1.bf16.xpose.msra.mxu0 %v674
        %692 = vmatprep.subr.bf16.mxu0 0
        %693 = vmatpush1.bf16.xpose.msra.mxu0 %v677
        %694 = vmatprep.subr.bf16.mxu0 0
        %695 = vmatpush1.bf16.xpose.msra.mxu0 %v680
        %696 = vmatprep.subr.bf16.mxu0 0
        %697 = vmatpush1.bf16.xpose.msra.mxu0 %v683
        %698 = vmatprep.subr.bf16.mxu0 0
        %699 = vmatpush1.bf16.xpose.msra.mxu0 %v686
        %700 = vmatprep.subr.bf16.mxu0 0
        %701 = vmatpush1.bf16.xpose.msra.mxu0 0
        %702 = vmatprep.subr.bf16.mxu0 0
        %703 = vmatpush1.bf16.xpose.msra.mxu0 0
        %704 = vmatprep.subr.bf16.mxu0 0
        %705 = vmatpush1.bf16.xpose.msra.mxu0 0
        %706 = vmatprep.subr.bf16.mxu0 0
        %707 = vmatpush1.bf16.xpose.msra.mxu0 0
        %708 = vmatprep.subr.bf16.mxu0 0
        %709 = vmatpush1.bf16.xpose.msra.mxu0 0
        %710 = vmatprep.subr.bf16.mxu0 0
        %711 = vmatpush1.bf16.xpose.msra.mxu0 0
        %712 = vmatprep.subr.bf16.mxu0 0
        %713 = vmatpush1.bf16.xpose.msra.mxu0 0
        %714 = vmatprep.subr.bf16.mxu0 0
        %715 = vmatpush1.bf16.xpose.msra.mxu0 0
        %716 = vmatprep.subr.bf16.mxu0 0
        %717 = vmatpush1.bf16.xpose.msra.mxu0 0
        %718 = vmatprep.subr.bf16.mxu0 0
        %719 = vmatpush1.bf16.xpose.msra.mxu0 0
        %720 = vmatprep.mubr.bf16.mxu0 0
        %721 = vmatmul.mubr.bf16.gmra.mrb[0].mxu0 %v668
        %v722 = vpop.f32.mrb[0].mxu0
        %v723 = vadd.f32 %v634, %v722
        %v724 = vpop.f32.mrb[0].mxu0
        %v725 = vpop.f32.mrb[0].mxu0
        %v726 = vpop.f32.mrb[0].mxu0
        %727 = vdwg.mxu0
        %729 = vrot.lane.b32.xlu0 %v723, 120
        %v730 = vpop.permute.xlu0 %729
        %732 = vrot.lane.b32.xlu0 %v723, 112
        %v733 = vpop.permute.xlu0 %732
        %735 = vrot.lane.b32.xlu0 %v723, 104
        %v736 = vpop.permute.xlu0 %735
        %738 = vrot.lane.b32.xlu0 %v723, 96
        %v739 = vpop.permute.xlu0 %738
        %741 = vrot.lane.b32.xlu0 %v723, 88
        %v742 = vpop.permute.xlu0 %741
        %744 = vrot.lane.b32.xlu0 %v723, 80
        %v745 = vpop.permute.xlu0 %744
        %747 = vrot.lane.b32.xlu0 %v723, 72
        %v748 = vpop.permute.xlu0 %747
        %750 = vrot.lane.b32.xlu0 %v723, 64
        %v751 = vpop.permute.xlu0 %750
        %753 = vrot.lane.b32.xlu0 %v723, 56
        %v754 = vpop.permute.xlu0 %753
        %756 = vrot.lane.b32.xlu0 %v723, 48
        %v757 = vpop.permute.xlu0 %756
        %759 = vrot.lane.b32.xlu0 %v723, 40
        %v760 = vpop.permute.xlu0 %759
        %v762 = vcombine.low %v723, %v733
        %v763 = vcombine.high %v723, %v733
        %v765 = vunpack.c.l.s4 1983009808
        %v766 = vunpack.c.0.s8 %v765
        %v767 = vlaneseq
        %v768 = vshrl.u32 %v767, 7
        %v769 = vsub.s32 %v766, %v768
        %v770 = vrot.slane %v762, %v769
        %v772 = vunpack.c.l.s4 1983009808
        %v773 = vunpack.c.0.s8 %v772
        %v774 = vlaneseq
        %v775 = vshrl.u32 %v774, 7
        %v776 = vsub.s32 %v773, %v775
        %v777 = vrot.slane %v763, %v776
        %v778 = vcombine.low %v730, %v736
        %v779 = vcombine.high %v730, %v736
        %v781 = vunpack.c.l.s4 1983009808
        %v782 = vunpack.c.0.s8 %v781
        %v783 = vlaneseq
        %v784 = vshrl.u32 %v783, 7
        %v785 = vsub.s32 %v782, %v784
        %v786 = vrot.slane %v778, %v785
        %v788 = vunpack.c.l.s4 1983009808
        %v789 = vunpack.c.0.s8 %v788
        %v790 = vlaneseq
        %v791 = vshrl.u32 %v790, 7
        %v792 = vsub.s32 %v789, %v791
        %v793 = vrot.slane %v779, %v792
        %v794 = vcombine.low %v739, %v745
        %v795 = vcombine.high %v739, %v745
        %v797 = vunpack.c.l.s4 1983009808
        %v798 = vunpack.c.0.s8 %v797
        %v799 = vlaneseq
        %v800 = vshrl.u32 %v799, 7
        %v801 = vsub.s32 %v798, %v800
        %v802 = vrot.slane %v794, %v801
        %v804 = vunpack.c.l.s4 1983009808
        %v805 = vunpack.c.0.s8 %v804
        %v806 = vlaneseq
        %v807 = vshrl.u32 %v806, 7
        %v808 = vsub.s32 %v805, %v807
        %v809 = vrot.slane %v795, %v808
        %v810 = vcombine.low %v742, %v748
        %v811 = vcombine.high %v742, %v748
        %v813 = vunpack.c.l.s4 1983009808
        %v814 = vunpack.c.0.s8 %v813
        %v815 = vlaneseq
        %v816 = vshrl.u32 %v815, 7
        %v817 = vsub.s32 %v814, %v816
        %v818 = vrot.slane %v810, %v817
        %v820 = vunpack.c.l.s4 1983009808
        %v821 = vunpack.c.0.s8 %v820
        %v822 = vlaneseq
        %v823 = vshrl.u32 %v822, 7
        %v824 = vsub.s32 %v821, %v823
        %v825 = vrot.slane %v811, %v824
        %v826 = vcombine.low %v770, %v786
        %v827 = vcombine.high %v770, %v786
        %v829 = vunpack.c.l.s4 1934713408
        %v830 = vunpack.c.0.s8 %v829
        %v831 = vlaneseq
        %v832 = vshrl.u32 %v831, 7
        %v833 = vsub.s32 %v830, %v832
        %v834 = vrot.slane %v826, %v833
        %v836 = vunpack.c.l.s4 1934713408
        %v837 = vunpack.c.0.s8 %v836
        %v838 = vlaneseq
        %v839 = vshrl.u32 %v838, 7
        %v840 = vsub.s32 %v837, %v839
        %v841 = vrot.slane %v827, %v840
        %v842 = vcombine.low %v777, %v793
        %v843 = vcombine.high %v777, %v793
        %v845 = vunpack.c.l.s4 1934713408
        %v846 = vunpack.c.0.s8 %v845
        %v847 = vlaneseq
        %v848 = vshrl.u32 %v847, 7
        %v849 = vsub.s32 %v846, %v848
        %v850 = vrot.slane %v842, %v849
        %v852 = vunpack.c.l.s4 1934713408
        %v853 = vunpack.c.0.s8 %v852
        %v854 = vlaneseq
        %v855 = vshrl.u32 %v854, 7
        %v856 = vsub.s32 %v853, %v855
        %v857 = vrot.slane %v843, %v856
        %v858 = vcombine.low %v802, %v818
        %v859 = vcombine.high %v802, %v818
        %v861 = vunpack.c.l.s4 1934713408
        %v862 = vunpack.c.0.s8 %v861
        %v863 = vlaneseq
        %v864 = vshrl.u32 %v863, 7
        %v865 = vsub.s32 %v862, %v864
        %v866 = vrot.slane %v858, %v865
        %v868 = vunpack.c.l.s4 1934713408
        %v869 = vunpack.c.0.s8 %v868
        %v870 = vlaneseq
        %v871 = vshrl.u32 %v870, 7
        %v872 = vsub.s32 %v869, %v871
        %v873 = vrot.slane %v859, %v872
        %v874 = vcombine.low %v809, %v825
        %v875 = vcombine.high %v809, %v825
        %v877 = vunpack.c.l.s4 1934713408
        %v878 = vunpack.c.0.s8 %v877
        %v879 = vlaneseq
        %v880 = vshrl.u32 %v879, 7
        %v881 = vsub.s32 %v878, %v880
        %v882 = vrot.slane %v874, %v881
        %v884 = vunpack.c.l.s4 1934713408
        %v885 = vunpack.c.0.s8 %v884
        %v886 = vlaneseq
        %v887 = vshrl.u32 %v886, 7
        %v888 = vsub.s32 %v885, %v887
        %v889 = vrot.slane %v875, %v888
        %v890 = vcombine.low %v834, %v866
        %v891 = vcombine.high %v834, %v866
        %v892 = vcombine.low %v841, %v873
        %v893 = vcombine.high %v841, %v873
        %v894 = vcombine.low %v850, %v882
        %v895 = vcombine.high %v850, %v882
        %v896 = vcombine.low %v857, %v889
        %v897 = vcombine.high %v857, %v889
        %v898 = vcombine.low %v751, %v757
        %v899 = vcombine.high %v751, %v757
        %v901 = vunpack.c.l.s4 1983009808
        %v902 = vunpack.c.0.s8 %v901
        %v903 = vlaneseq
        %v904 = vshrl.u32 %v903, 7
        %v905 = vsub.s32 %v902, %v904
        %v906 = vrot.slane %v898, %v905
        %v908 = vunpack.c.l.s4 1983009808
        %v909 = vunpack.c.0.s8 %v908
        %v910 = vlaneseq
        %v911 = vshrl.u32 %v910, 7
        %v912 = vsub.s32 %v909, %v911
        %v913 = vrot.slane %v899, %v912
        %v914 = vcombine.low %v754, %v760
        %v915 = vcombine.high %v754, %v760
        %v917 = vunpack.c.l.s4 1983009808
        %v918 = vunpack.c.0.s8 %v917
        %v919 = vlaneseq
        %v920 = vshrl.u32 %v919, 7
        %v921 = vsub.s32 %v918, %v920
        %v922 = vrot.slane %v914, %v921
        %v924 = vunpack.c.l.s4 1983009808
        %v925 = vunpack.c.0.s8 %v924
        %v926 = vlaneseq
        %v927 = vshrl.u32 %v926, 7
        %v928 = vsub.s32 %v925, %v927
        %v929 = vrot.slane %v915, %v928
        %v930 = vcombine.low %v906, %v922
        %v931 = vcombine.high %v906, %v922
        %v933 = vunpack.c.l.s4 1934713408
        %v934 = vunpack.c.0.s8 %v933
        %v935 = vlaneseq
        %v936 = vshrl.u32 %v935, 7
        %v937 = vsub.s32 %v934, %v936
        %v938 = vrot.slane %v930, %v937
        %v940 = vunpack.c.l.s4 1934713408
        %v941 = vunpack.c.0.s8 %v940
        %v942 = vlaneseq
        %v943 = vshrl.u32 %v942, 7
        %v944 = vsub.s32 %v941, %v943
        %v945 = vrot.slane %v931, %v944
        %v946 = vcombine.low %v913, %v929
        %v947 = vcombine.high %v913, %v929
        %v949 = vunpack.c.l.s4 1934713408
        %v950 = vunpack.c.0.s8 %v949
        %v951 = vlaneseq
        %v952 = vshrl.u32 %v951, 7
        %v953 = vsub.s32 %v950, %v952
        %v954 = vrot.slane %v946, %v953
        %v956 = vunpack.c.l.s4 1934713408
        %v957 = vunpack.c.0.s8 %v956
        %v958 = vlaneseq
        %v959 = vshrl.u32 %v958, 7
        %v960 = vsub.s32 %v957, %v959
        %v961 = vrot.slane %v947, %v960
        %v962 = vcombine.high %v938, 0.0
        %v963 = vcombine.high %v945, 0.0
        %v964 = vcombine.high %v954, 0.0
        %v965 = vcombine.high %v961, 0.0
        %v966 = vcombine.low %v890, %v892
        %v967 = vcombine.high %v890, %v892
        %v969 = vunpack.c.l.s4 1983009808
        %v970 = vunpack.c.0.s8 %v969
        %v971 = vlaneseq
        %v972 = vshrl.u32 %v971, 7
        %v973 = vsub.s32 %v970, %v972
        %v974 = vrot.slane %v966, %v973
        %v976 = vunpack.c.l.s4 1983009808
        %v977 = vunpack.c.0.s8 %v976
        %v978 = vlaneseq
        %v979 = vshrl.u32 %v978, 7
        %v980 = vsub.s32 %v977, %v979
        %v981 = vrot.slane %v967, %v980
        %v982 = vcombine.low %v891, %v893
        %v983 = vcombine.high %v891, %v893
        %v985 = vunpack.c.l.s4 1983009808
        %v986 = vunpack.c.0.s8 %v985
        %v987 = vlaneseq
        %v988 = vshrl.u32 %v987, 7
        %v989 = vsub.s32 %v986, %v988
        %v990 = vrot.slane %v982, %v989
        %v992 = vunpack.c.l.s4 1983009808
        %v993 = vunpack.c.0.s8 %v992
        %v994 = vlaneseq
        %v995 = vshrl.u32 %v994, 7
        %v996 = vsub.s32 %v993, %v995
        %v997 = vrot.slane %v983, %v996
        %v998 = vcombine.low %v894, %v896
        %v999 = vcombine.high %v894, %v896
        %v1001 = vunpack.c.l.s4 1983009808
        %v1002 = vunpack.c.0.s8 %v1001
        %v1003 = vlaneseq
        %v1004 = vshrl.u32 %v1003, 7
        %v1005 = vsub.s32 %v1002, %v1004
        %v1006 = vrot.slane %v998, %v1005
        %v1008 = vunpack.c.l.s4 1983009808
        %v1009 = vunpack.c.0.s8 %v1008
        %v1010 = vlaneseq
        %v1011 = vshrl.u32 %v1010, 7
        %v1012 = vsub.s32 %v1009, %v1011
        %v1013 = vrot.slane %v999, %v1012
        %v1014 = vcombine.low %v895, %v897
        %v1015 = vcombine.high %v895, %v897
        %v1017 = vunpack.c.l.s4 1983009808
        %v1018 = vunpack.c.0.s8 %v1017
        %v1019 = vlaneseq
        %v1020 = vshrl.u32 %v1019, 7
        %v1021 = vsub.s32 %v1018, %v1020
        %v1022 = vrot.slane %v1014, %v1021
        %v1024 = vunpack.c.l.s4 1983009808
        %v1025 = vunpack.c.0.s8 %v1024
        %v1026 = vlaneseq
        %v1027 = vshrl.u32 %v1026, 7
        %v1028 = vsub.s32 %v1025, %v1027
        %v1029 = vrot.slane %v1015, %v1028
        %v1030 = vcombine.low %v974, %v990
        %v1031 = vcombine.high %v974, %v990
        %v1033 = vunpack.c.l.s4 1934713408
        %v1034 = vunpack.c.0.s8 %v1033
        %v1035 = vlaneseq
        %v1036 = vshrl.u32 %v1035, 7
        %v1037 = vsub.s32 %v1034, %v1036
        %v1038 = vrot.slane %v1030, %v1037
        %v1040 = vunpack.c.l.s4 1934713408
        %v1041 = vunpack.c.0.s8 %v1040
        %v1042 = vlaneseq
        %v1043 = vshrl.u32 %v1042, 7
        %v1044 = vsub.s32 %v1041, %v1043
        %v1045 = vrot.slane %v1031, %v1044
        %v1046 = vcombine.low %v981, %v997
        %v1047 = vcombine.high %v981, %v997
        %v1049 = vunpack.c.l.s4 1934713408
        %v1050 = vunpack.c.0.s8 %v1049
        %v1051 = vlaneseq
        %v1052 = vshrl.u32 %v1051, 7
        %v1053 = vsub.s32 %v1050, %v1052
        %v1054 = vrot.slane %v1046, %v1053
        %v1056 = vunpack.c.l.s4 1934713408
        %v1057 = vunpack.c.0.s8 %v1056
        %v1058 = vlaneseq
        %v1059 = vshrl.u32 %v1058, 7
        %v1060 = vsub.s32 %v1057, %v1059
        %v1061 = vrot.slane %v1047, %v1060
        %v1062 = vcombine.low %v1006, %v1022
        %v1063 = vcombine.high %v1006, %v1022
        %v1065 = vunpack.c.l.s4 1934713408
        %v1066 = vunpack.c.0.s8 %v1065
        %v1067 = vlaneseq
        %v1068 = vshrl.u32 %v1067, 7
        %v1069 = vsub.s32 %v1066, %v1068
        %v1070 = vrot.slane %v1062, %v1069
        %v1072 = vunpack.c.l.s4 1934713408
        %v1073 = vunpack.c.0.s8 %v1072
        %v1074 = vlaneseq
        %v1075 = vshrl.u32 %v1074, 7
        %v1076 = vsub.s32 %v1073, %v1075
        %v1077 = vrot.slane %v1063, %v1076
        %v1078 = vcombine.low %v1013, %v1029
        %v1079 = vcombine.high %v1013, %v1029
        %v1081 = vunpack.c.l.s4 1934713408
        %v1082 = vunpack.c.0.s8 %v1081
        %v1083 = vlaneseq
        %v1084 = vshrl.u32 %v1083, 7
        %v1085 = vsub.s32 %v1082, %v1084
        %v1086 = vrot.slane %v1078, %v1085
        %v1088 = vunpack.c.l.s4 1934713408
        %v1089 = vunpack.c.0.s8 %v1088
        %v1090 = vlaneseq
        %v1091 = vshrl.u32 %v1090, 7
        %v1092 = vsub.s32 %v1089, %v1091
        %v1093 = vrot.slane %v1079, %v1092
        %v1094 = vcombine.low %v1038, %v1070
        %v1095 = vcombine.high %v1038, %v1070
        %v1096 = vcombine.low %v1045, %v1077
        %v1097 = vcombine.high %v1045, %v1077
        %v1098 = vcombine.low %v1054, %v1086
        %v1099 = vcombine.high %v1054, %v1086
        %v1100 = vcombine.low %v1061, %v1093
        %v1101 = vcombine.high %v1061, %v1093
        %v1102 = vcombine.low %v938, %v945
        %v1104 = vunpack.c.l.s4 1983009808
        %v1105 = vunpack.c.0.s8 %v1104
        %v1106 = vlaneseq
        %v1107 = vshrl.u32 %v1106, 7
        %v1108 = vsub.s32 %v1105, %v1107
        %v1109 = vrot.slane %v1102, %v1108
        %v1110 = vcombine.low %v962, %v963
        %v1112 = vunpack.c.l.s4 1983009808
        %v1113 = vunpack.c.0.s8 %v1112
        %v1114 = vlaneseq
        %v1115 = vshrl.u32 %v1114, 7
        %v1116 = vsub.s32 %v1113, %v1115
        %v1117 = vrot.slane %v1110, %v1116
        %v1118 = vcombine.low %v954, %v961
        %v1120 = vunpack.c.l.s4 1983009808
        %v1121 = vunpack.c.0.s8 %v1120
        %v1122 = vlaneseq
        %v1123 = vshrl.u32 %v1122, 7
        %v1124 = vsub.s32 %v1121, %v1123
        %v1125 = vrot.slane %v1118, %v1124
        %v1126 = vcombine.low %v964, %v965
        %v1128 = vunpack.c.l.s4 1983009808
        %v1129 = vunpack.c.0.s8 %v1128
        %v1130 = vlaneseq
        %v1131 = vshrl.u32 %v1130, 7
        %v1132 = vsub.s32 %v1129, %v1131
        %v1133 = vrot.slane %v1126, %v1132
        %v1134 = vcombine.low %v1109, %v1117
        %v1135 = vcombine.high %v1109, %v1117
        %v1137 = vunpack.c.l.s4 1934713408
        %v1138 = vunpack.c.0.s8 %v1137
        %v1139 = vlaneseq
        %v1140 = vshrl.u32 %v1139, 7
        %v1141 = vsub.s32 %v1138, %v1140
        %v1142 = vrot.slane %v1134, %v1141
        %v1144 = vunpack.c.l.s4 1934713408
        %v1145 = vunpack.c.0.s8 %v1144
        %v1146 = vlaneseq
        %v1147 = vshrl.u32 %v1146, 7
        %v1148 = vsub.s32 %v1145, %v1147
        %v1149 = vrot.slane %v1135, %v1148
        %v1150 = vcombine.low %v1125, %v1133
        %v1151 = vcombine.high %v1125, %v1133
        %v1153 = vunpack.c.l.s4 1934713408
        %v1154 = vunpack.c.0.s8 %v1153
        %v1155 = vlaneseq
        %v1156 = vshrl.u32 %v1155, 7
        %v1157 = vsub.s32 %v1154, %v1156
        %v1158 = vrot.slane %v1150, %v1157
        %v1160 = vunpack.c.l.s4 1934713408
        %v1161 = vunpack.c.0.s8 %v1160
        %v1162 = vlaneseq
        %v1163 = vshrl.u32 %v1162, 7
        %v1164 = vsub.s32 %v1161, %v1163
        %v1165 = vrot.slane %v1151, %v1164
        %v1166 = vcombine.low %v1142, %v1158
        %v1167 = vcombine.high %v1142, %v1158
        %v1168 = vcombine.low %v1149, %v1165
        %v1169 = vcombine.high %v1149, %v1165
        %v1170 = vmul.f32 %v1094, 0.35355338
        %v1171 = vmul.f32 %v1095, 0.35355338
        %v1172 = vmul.f32 %v1096, 0.35355338
        %v1173 = vmul.f32 %v1097, 0.35355338
        %v1174 = vpack.c.bf16 %v1170, %v1170
        %v1175 = vpack.c.bf16 %v1171, %v1171
        %v1176 = vpack.c.bf16 %v1172, %v1172
        %v1177 = vpack.c.bf16 %v1173, %v1173
        %v1178 = vpack.c.bf16 %v1098, %v1098
        %v1179 = vpack.c.bf16 %v1099, %v1099
        %v1180 = vpack.c.bf16 %v1100, %v1100
        %v1181 = vpack.c.bf16 %v1101, %v1101
        %v1182 = vpack.c.bf16 %v1166, %v1166
        %v1183 = vpack.c.bf16 %v1167, %v1167
        %v1184 = vpack.c.bf16 %v1168, %v1168
        %v1185 = vpack.c.bf16 %v1169, %v1169
        %vm1186 = vcmask 64512
        %v1188 = vsel %vm1186, %v1174, 0
        %v1191 = vsel %vm1186, %v1178, 0
        %1193 = vmatprep.subr.bf16.mxu0 0
        %1194 = vmatpush1.bf16.xpose.msra.mxu0 %v1191
        %1195 = vmatprep.subr.bf16.mxu0 0
        %1196 = vmatpush1.bf16.xpose.msra.mxu0 0
        %1197 = vmatprep.subr.bf16.mxu0 0
        %1198 = vmatpush1.bf16.xpose.msra.mxu0 0
        %1199 = vmatprep.subr.bf16.mxu0 0
        %1200 = vmatpush1.bf16.xpose.msra.mxu0 0
        %1201 = vmatprep.subr.bf16.mxu0 0
        %1202 = vmatpush1.bf16.xpose.msra.mxu0 0
        %1203 = vmatprep.subr.bf16.mxu0 0
        %1204 = vmatpush1.bf16.xpose.msra.mxu0 0
        %1205 = vmatprep.subr.bf16.mxu0 0
        %1206 = vmatpush1.bf16.xpose.msra.mxu0 0
        %1207 = vmatprep.subr.bf16.mxu0 0
        %1208 = vmatpush1.bf16.xpose.msra.mxu0 0
        %1209 = vmatprep.subr.bf16.mxu0 0
        %1210 = vmatpush1.bf16.xpose.msra.mxu0 0
        %1211 = vmatprep.subr.bf16.mxu0 0
        %1212 = vmatpush1.bf16.xpose.msra.mxu0 0
        %1213 = vmatprep.subr.bf16.mxu0 0
        %1214 = vmatpush1.bf16.xpose.msra.mxu0 0
        %1215 = vmatprep.subr.bf16.mxu0 0
        %1216 = vmatpush1.bf16.xpose.msra.mxu0 0
        %1217 = vmatprep.subr.bf16.mxu0 0
        %1218 = vmatpush1.bf16.xpose.msra.mxu0 0
        %1219 = vmatprep.subr.bf16.mxu0 0
        %1220 = vmatpush1.bf16.xpose.msra.mxu0 0
        %1221 = vmatprep.subr.bf16.mxu0 0
        %1222 = vmatpush1.bf16.xpose.msra.mxu0 0
        %1223 = vmatprep.subr.bf16.mxu0 0
        %1224 = vmatpush1.bf16.xpose.msra.mxu0 0
        %1225 = vmatprep.mubr.bf16.mxu0 0
        %1226 = vmatmul.mubr.bf16.gmra.mrb[0].mxu0 %v1188
        %v1227 = vpop.f32.mrb[0].mxu0
        %v1228 = vadd.f32 0.0, %v1227
        %v1229 = vpop.f32.mrb[0].mxu0
        %v1230 = vpop.f32.mrb[0].mxu0
        %v1231 = vpop.f32.mrb[0].mxu0
        %1232 = vdwg.mxu0
        %v1234 = vsel %vm1186, %v1175, 0
        %v1237 = vsel %vm1186, %v1179, 0
        %1239 = vmatprep.subr.bf16.mxu0 0
        %1240 = vmatpush1.bf16.xpose.msra.mxu0 %v1237
        %1241 = vmatprep.subr.bf16.mxu0 0
        %1242 = vmatpush1.bf16.xpose.msra.mxu0 0
        %1243 = vmatprep.subr.bf16.mxu0 0
        %1244 = vmatpush1.bf16.xpose.msra.mxu0 0
        %1245 = vmatprep.subr.bf16.mxu0 0
        %1246 = vmatpush1.bf16.xpose.msra.mxu0 0
        %1247 = vmatprep.subr.bf16.mxu0 0
        %1248 = vmatpush1.bf16.xpose.msra.mxu0 0
        %1249 = vmatprep.subr.bf16.mxu0 0
        %1250 = vmatpush1.bf16.xpose.msra.mxu0 0
        %1251 = vmatprep.subr.bf16.mxu0 0
        %1252 = vmatpush1.bf16.xpose.msra.mxu0 0
        %1253 = vmatprep.subr.bf16.mxu0 0
        %1254 = vmatpush1.bf16.xpose.msra.mxu0 0
        %1255 = vmatprep.subr.bf16.mxu0 0
        %1256 = vmatpush1.bf16.xpose.msra.mxu0 0
        %1257 = vmatprep.subr.bf16.mxu0 0
        %1258 = vmatpush1.bf16.xpose.msra.mxu0 0
        %1259 = vmatprep.subr.bf16.mxu0 0
        %1260 = vmatpush1.bf16.xpose.msra.mxu0 0
        %1261 = vmatprep.subr.bf16.mxu0 0
        %1262 = vmatpush1.bf16.xpose.msra.mxu0 0
        %1263 = vmatprep.subr.bf16.mxu0 0
        %1264 = vmatpush1.bf16.xpose.msra.mxu0 0
        %1265 = vmatprep.subr.bf16.mxu0 0
        %1266 = vmatpush1.bf16.xpose.msra.mxu0 0
        %1267 = vmatprep.subr.bf16.mxu0 0
        %1268 = vmatpush1.bf16.xpose.msra.mxu0 0
        %1269 = vmatprep.subr.bf16.mxu0 0
        %1270 = vmatpush1.bf16.xpose.msra.mxu0 0
        %1271 = vmatprep.mubr.bf16.mxu0 0
        %1272 = vmatmul.mubr.bf16.gmra.mrb[0].mxu0 %v1234
        %v1273 = vpop.f32.mrb[0].mxu0
        %v1274 = vadd.f32 0.0, %v1273
        %v1275 = vpop.f32.mrb[0].mxu0
        %v1276 = vpop.f32.mrb[0].mxu0
        %v1277 = vpop.f32.mrb[0].mxu0
        %1278 = vdwg.mxu0
        %v1280 = vsel %vm1186, %v1176, 0
        %v1283 = vsel %vm1186, %v1180, 0
        %1285 = vmatprep.subr.bf16.mxu0 0
        %1286 = vmatpush1.bf16.xpose.msra.mxu0 %v1283
        %1287 = vmatprep.subr.bf16.mxu0 0
        %1288 = vmatpush1.bf16.xpose.msra.mxu0 0
        %1289 = vmatprep.subr.bf16.mxu0 0
        %1290 = vmatpush1.bf16.xpose.msra.mxu0 0
        %1291 = vmatprep.subr.bf16.mxu0 0
        %1292 = vmatpush1.bf16.xpose.msra.mxu0 0
        %1293 = vmatprep.subr.bf16.mxu0 0
        %1294 = vmatpush1.bf16.xpose.msra.mxu0 0
        %1295 = vmatprep.subr.bf16.mxu0 0
        %1296 = vmatpush1.bf16.xpose.msra.mxu0 0
        %1297 = vmatprep.subr.bf16.mxu0 0
        %1298 = vmatpush1.bf16.xpose.msra.mxu0 0
        %1299 = vmatprep.subr.bf16.mxu0 0
        %1300 = vmatpush1.bf16.xpose.msra.mxu0 0
        %1301 = vmatprep.subr.bf16.mxu0 0
        %1302 = vmatpush1.bf16.xpose.msra.mxu0 0
        %1303 = vmatprep.subr.bf16.mxu0 0
        %1304 = vmatpush1.bf16.xpose.msra.mxu0 0
        %1305 = vmatprep.subr.bf16.mxu0 0
        %1306 = vmatpush1.bf16.xpose.msra.mxu0 0
        %1307 = vmatprep.subr.bf16.mxu0 0
        %1308 = vmatpush1.bf16.xpose.msra.mxu0 0
        %1309 = vmatprep.subr.bf16.mxu0 0
        %1310 = vmatpush1.bf16.xpose.msra.mxu0 0
        %1311 = vmatprep.subr.bf16.mxu0 0
        %1312 = vmatpush1.bf16.xpose.msra.mxu0 0
        %1313 = vmatprep.subr.bf16.mxu0 0
        %1314 = vmatpush1.bf16.xpose.msra.mxu0 0
        %1315 = vmatprep.subr.bf16.mxu0 0
        %1316 = vmatpush1.bf16.xpose.msra.mxu0 0
        %1317 = vmatprep.mubr.bf16.mxu0 0
        %1318 = vmatmul.mubr.bf16.gmra.mrb[0].mxu0 %v1280
        %v1319 = vpop.f32.mrb[0].mxu0
        %v1320 = vadd.f32 0.0, %v1319
        %v1321 = vpop.f32.mrb[0].mxu0
        %v1322 = vpop.f32.mrb[0].mxu0
        %v1323 = vpop.f32.mrb[0].mxu0
        %1324 = vdwg.mxu0
        %v1326 = vsel %vm1186, %v1177, 0
        %v1329 = vsel %vm1186, %v1181, 0
        %1331 = vmatprep.subr.bf16.mxu0 0
        %1332 = vmatpush1.bf16.xpose.msra.mxu0 %v1329
        %1333 = vmatprep.subr.bf16.mxu0 0
        %1334 = vmatpush1.bf16.xpose.msra.mxu0 0
        %1335 = vmatprep.subr.bf16.mxu0 0
        %1336 = vmatpush1.bf16.xpose.msra.mxu0 0
        %1337 = vmatprep.subr.bf16.mxu0 0
        %1338 = vmatpush1.bf16.xpose.msra.mxu0 0
        %1339 = vmatprep.subr.bf16.mxu0 0
        %1340 = vmatpush1.bf16.xpose.msra.mxu0 0
        %1341 = vmatprep.subr.bf16.mxu0 0
        %1342 = vmatpush1.bf16.xpose.msra.mxu0 0
        %1343 = vmatprep.subr.bf16.mxu0 0
        %1344 = vmatpush1.bf16.xpose.msra.mxu0 0
        %1345 = vmatprep.subr.bf16.mxu0 0
        %1346 = vmatpush1.bf16.xpose.msra.mxu0 0
        %1347 = vmatprep.subr.bf16.mxu0 0
        %1348 = vmatpush1.bf16.xpose.msra.mxu0 0
        %1349 = vmatprep.subr.bf16.mxu0 0
        %1350 = vmatpush1.bf16.xpose.msra.mxu0 0
        %1351 = vmatprep.subr.bf16.mxu0 0
        %1352 = vmatpush1.bf16.xpose.msra.mxu0 0
        %1353 = vmatprep.subr.bf16.mxu0 0
        %1354 = vmatpush1.bf16.xpose.msra.mxu0 0
        %1355 = vmatprep.subr.bf16.mxu0 0
        %1356 = vmatpush1.bf16.xpose.msra.mxu0 0
        %1357 = vmatprep.subr.bf16.mxu0 0
        %1358 = vmatpush1.bf16.xpose.msra.mxu0 0
        %1359 = vmatprep.subr.bf16.mxu0 0
        %1360 = vmatpush1.bf16.xpose.msra.mxu0 0
        %1361 = vmatprep.subr.bf16.mxu0 0
        %1362 = vmatpush1.bf16.xpose.msra.mxu0 0
        %1363 = vmatprep.mubr.bf16.mxu0 0
        %1364 = vmatmul.mubr.bf16.gmra.mrb[0].mxu0 %v1326
        %v1365 = vpop.f32.mrb[0].mxu0
        %v1366 = vadd.f32 0.0, %v1365
        %v1367 = vpop.f32.mrb[0].mxu0
        %v1368 = vpop.f32.mrb[0].mxu0
        %v1369 = vpop.f32.mrb[0].mxu0
        %1370 = vdwg.mxu0
        %v1371 = vsel %vm1186, %v1228, -inf
        %1372 = vmax.xlane.f32.xlu0 %v1371
        %v1373 = vpop.xlane.xlu0 %1372
        %v1374 = vsel %vm1186, %v1274, -inf
        %1375 = vmax.xlane.f32.xlu0 %v1374
        %v1376 = vpop.xlane.xlu0 %1375
        %v1377 = vsel %vm1186, %v1320, -inf
        %1378 = vmax.xlane.f32.xlu0 %v1377
        %v1379 = vpop.xlane.xlu0 %1378
        %v1380 = vsel %vm1186, %v1366, -inf
        %1381 = vmax.xlane.f32.xlu0 %v1380
        %v1382 = vpop.xlane.xlu0 %1381
        %v1383 = vsub.f32 %v1228, %v1373
        %v1384 = vsub.f32 %v1274, %v1376
        %v1385 = vsub.f32 %v1320, %v1379
        %v1386 = vsub.f32 %v1366, %v1382
        %v1387 = vmul.f32 %v1383, 1.442695
        %v1388 = vpow.pop %v1387
        %v1389 = vmul.f32 %v1384, 1.442695
        %v1390 = vpow.pop %v1389
        %v1391 = vmul.f32 %v1385, 1.442695
        %v1392 = vpow.pop %v1391
        %v1393 = vmul.f32 %v1386, 1.442695
        %v1394 = vpow.pop %v1393
        %v1395 = vsel %vm1186, %v1388, 0.0
        %1396 = vadd.xlane.f32.xlu0 %v1395
        %v1397 = vpop.xlane.xlu0 %1396
        %v1398 = vsel %vm1186, %v1390, 0.0
        %1399 = vadd.xlane.f32.xlu0 %v1398
        %v1400 = vpop.xlane.xlu0 %1399
        %v1401 = vsel %vm1186, %v1392, 0.0
        %1402 = vadd.xlane.f32.xlu0 %v1401
        %v1403 = vpop.xlane.xlu0 %1402
        %v1404 = vsel %vm1186, %v1394, 0.0
        %1405 = vadd.xlane.f32.xlu0 %v1404
        %v1406 = vpop.xlane.xlu0 %1405
        %v1407 = vpack.c.bf16 %v1388, %v1388
        %v1408 = vpack.c.bf16 %v1390, %v1390
        %v1409 = vpack.c.bf16 %v1392, %v1392
        %v1410 = vpack.c.bf16 %v1394, %v1394
        %v1412 = vsel %vm1186, %v1407, 0
        %vm1414 = vcmask 1043456
        %v1416 = vsel %vm1414, %v1182, 0
        %1418 = vmatprep.subr.bf16.mxu0 0
        %1419 = vmatpush1.bf16.msra.mxu0 %v1416
        %1420 = vmatprep.subr.bf16.mxu0 0
        %1421 = vmatpush1.bf16.msra.mxu0 0
        %1422 = vmatprep.subr.bf16.mxu0 0
        %1423 = vmatpush1.bf16.msra.mxu0 0
        %1424 = vmatprep.subr.bf16.mxu0 0
        %1425 = vmatpush1.bf16.msra.mxu0 0
        %1426 = vmatprep.subr.bf16.mxu0 0
        %1427 = vmatpush1.bf16.msra.mxu0 0
        %1428 = vmatprep.subr.bf16.mxu0 0
        %1429 = vmatpush1.bf16.msra.mxu0 0
        %1430 = vmatprep.subr.bf16.mxu0 0
        %1431 = vmatpush1.bf16.msra.mxu0 0
        %1432 = vmatprep.subr.bf16.mxu0 0
        %1433 = vmatpush1.bf16.msra.mxu0 0
        %1434 = vmatprep.subr.bf16.mxu0 0
        %1435 = vmatpush1.bf16.msra.mxu0 0
        %1436 = vmatprep.subr.bf16.mxu0 0
        %1437 = vmatpush1.bf16.msra.mxu0 0
        %1438 = vmatprep.subr.bf16.mxu0 0
        %1439 = vmatpush1.bf16.msra.mxu0 0
        %1440 = vmatprep.subr.bf16.mxu0 0
        %1441 = vmatpush1.bf16.msra.mxu0 0
        %1442 = vmatprep.subr.bf16.mxu0 0
        %1443 = vmatpush1.bf16.msra.mxu0 0
        %1444 = vmatprep.subr.bf16.mxu0 0
        %1445 = vmatpush1.bf16.msra.mxu0 0
        %1446 = vmatprep.subr.bf16.mxu0 0
        %1447 = vmatpush1.bf16.msra.mxu0 0
        %1448 = vmatprep.subr.bf16.mxu0 0
        %1449 = vmatpush1.bf16.msra.mxu0 0
        %1450 = vmatprep.mubr.bf16.mxu0 0
        %1451 = vmatmul.mubr.bf16.gmra.mrb[0].mxu0 %v1412
        %v1452 = vpop.f32.mrb[0].mxu0
        %v1453 = vadd.f32 0.0, %v1452
        %v1454 = vpop.f32.mrb[0].mxu0
        %v1455 = vpop.f32.mrb[0].mxu0
        %v1456 = vpop.f32.mrb[0].mxu0
        %1457 = vdwg.mxu0
        %v1459 = vsel %vm1186, %v1408, 0
        %v1462 = vsel %vm1414, %v1183, 0
        %1464 = vmatprep.subr.bf16.mxu0 0
        %1465 = vmatpush1.bf16.msra.mxu0 %v1462
        %1466 = vmatprep.subr.bf16.mxu0 0
        %1467 = vmatpush1.bf16.msra.mxu0 0
        %1468 = vmatprep.subr.bf16.mxu0 0
        %1469 = vmatpush1.bf16.msra.mxu0 0
        %1470 = vmatprep.subr.bf16.mxu0 0
        %1471 = vmatpush1.bf16.msra.mxu0 0
        %1472 = vmatprep.subr.bf16.mxu0 0
        %1473 = vmatpush1.bf16.msra.mxu0 0
        %1474 = vmatprep.subr.bf16.mxu0 0
        %1475 = vmatpush1.bf16.msra.mxu0 0
        %1476 = vmatprep.subr.bf16.mxu0 0
        %1477 = vmatpush1.bf16.msra.mxu0 0
        %1478 = vmatprep.subr.bf16.mxu0 0
        %1479 = vmatpush1.bf16.msra.mxu0 0
        %1480 = vmatprep.subr.bf16.mxu0 0
        %1481 = vmatpush1.bf16.msra.mxu0 0
        %1482 = vmatprep.subr.bf16.mxu0 0
        %1483 = vmatpush1.bf16.msra.mxu0 0
        %1484 = vmatprep.subr.bf16.mxu0 0
        %1485 = vmatpush1.bf16.msra.mxu0 0
        %1486 = vmatprep.subr.bf16.mxu0 0
        %1487 = vmatpush1.bf16.msra.mxu0 0
        %1488 = vmatprep.subr.bf16.mxu0 0
        %1489 = vmatpush1.bf16.msra.mxu0 0
        %1490 = vmatprep.subr.bf16.mxu0 0
        %1491 = vmatpush1.bf16.msra.mxu0 0
        %1492 = vmatprep.subr.bf16.mxu0 0
        %1493 = vmatpush1.bf16.msra.mxu0 0
        %1494 = vmatprep.subr.bf16.mxu0 0
        %1495 = vmatpush1.bf16.msra.mxu0 0
        %1496 = vmatprep.mubr.bf16.mxu0 0
        %1497 = vmatmul.mubr.bf16.gmra.mrb[0].mxu0 %v1459
        %v1498 = vpop.f32.mrb[0].mxu0
        %v1499 = vadd.f32 0.0, %v1498
        %v1500 = vpop.f32.mrb[0].mxu0
        %v1501 = vpop.f32.mrb[0].mxu0
        %v1502 = vpop.f32.mrb[0].mxu0
        %1503 = vdwg.mxu0
        %v1505 = vsel %vm1186, %v1409, 0
        %v1508 = vsel %vm1414, %v1184, 0
        %1510 = vmatprep.subr.bf16.mxu0 0
        %1511 = vmatpush1.bf16.msra.mxu0 %v1508
        %1512 = vmatprep.subr.bf16.mxu0 0
        %1513 = vmatpush1.bf16.msra.mxu0 0
        %1514 = vmatprep.subr.bf16.mxu0 0
        %1515 = vmatpush1.bf16.msra.mxu0 0
        %1516 = vmatprep.subr.bf16.mxu0 0
        %1517 = vmatpush1.bf16.msra.mxu0 0
        %1518 = vmatprep.subr.bf16.mxu0 0
        %1519 = vmatpush1.bf16.msra.mxu0 0
        %1520 = vmatprep.subr.bf16.mxu0 0
        %1521 = vmatpush1.bf16.msra.mxu0 0
        %1522 = vmatprep.subr.bf16.mxu0 0
        %1523 = vmatpush1.bf16.msra.mxu0 0
        %1524 = vmatprep.subr.bf16.mxu0 0
        %1525 = vmatpush1.bf16.msra.mxu0 0
        %1526 = vmatprep.subr.bf16.mxu0 0
        %1527 = vmatpush1.bf16.msra.mxu0 0
        %1528 = vmatprep.subr.bf16.mxu0 0
        %1529 = vmatpush1.bf16.msra.mxu0 0
        %1530 = vmatprep.subr.bf16.mxu0 0
        %1531 = vmatpush1.bf16.msra.mxu0 0
        %1532 = vmatprep.subr.bf16.mxu0 0
        %1533 = vmatpush1.bf16.msra.mxu0 0
        %1534 = vmatprep.subr.bf16.mxu0 0
        %1535 = vmatpush1.bf16.msra.mxu0 0
        %1536 = vmatprep.subr.bf16.mxu0 0
        %1537 = vmatpush1.bf16.msra.mxu0 0
        %1538 = vmatprep.subr.bf16.mxu0 0
        %1539 = vmatpush1.bf16.msra.mxu0 0
        %1540 = vmatprep.subr.bf16.mxu0 0
        %1541 = vmatpush1.bf16.msra.mxu0 0
        %1542 = vmatprep.mubr.bf16.mxu0 0
        %1543 = vmatmul.mubr.bf16.gmra.mrb[0].mxu0 %v1505
        %v1544 = vpop.f32.mrb[0].mxu0
        %v1545 = vadd.f32 0.0, %v1544
        %v1546 = vpop.f32.mrb[0].mxu0
        %v1547 = vpop.f32.mrb[0].mxu0
        %v1548 = vpop.f32.mrb[0].mxu0
        %1549 = vdwg.mxu0
        %v1551 = vsel %vm1186, %v1410, 0
        %v1554 = vsel %vm1414, %v1185, 0
        %1556 = vmatprep.subr.bf16.mxu0 0
        %1557 = vmatpush1.bf16.msra.mxu0 %v1554
        %1558 = vmatprep.subr.bf16.mxu0 0
        %1559 = vmatpush1.bf16.msra.mxu0 0
        %1560 = vmatprep.subr.bf16.mxu0 0
        %1561 = vmatpush1.bf16.msra.mxu0 0
        %1562 = vmatprep.subr.bf16.mxu0 0
        %1563 = vmatpush1.bf16.msra.mxu0 0
        %1564 = vmatprep.subr.bf16.mxu0 0
        %1565 = vmatpush1.bf16.msra.mxu0 0
        %1566 = vmatprep.subr.bf16.mxu0 0
        %1567 = vmatpush1.bf16.msra.mxu0 0
        %1568 = vmatprep.subr.bf16.mxu0 0
        %1569 = vmatpush1.bf16.msra.mxu0 0
        %1570 = vmatprep.subr.bf16.mxu0 0
        %1571 = vmatpush1.bf16.msra.mxu0 0
        %1572 = vmatprep.subr.bf16.mxu0 0
        %1573 = vmatpush1.bf16.msra.mxu0 0
        %1574 = vmatprep.subr.bf16.mxu0 0
        %1575 = vmatpush1.bf16.msra.mxu0 0
        %1576 = vmatprep.subr.bf16.mxu0 0
        %1577 = vmatpush1.bf16.msra.mxu0 0
        %1578 = vmatprep.subr.bf16.mxu0 0
        %1579 = vmatpush1.bf16.msra.mxu0 0
        %1580 = vmatprep.subr.bf16.mxu0 0
        %1581 = vmatpush1.bf16.msra.mxu0 0
        %1582 = vmatprep.subr.bf16.mxu0 0
        %1583 = vmatpush1.bf16.msra.mxu0 0
        %1584 = vmatprep.subr.bf16.mxu0 0
        %1585 = vmatpush1.bf16.msra.mxu0 0
        %1586 = vmatprep.subr.bf16.mxu0 0
        %1587 = vmatpush1.bf16.msra.mxu0 0
        %1588 = vmatprep.mubr.bf16.mxu0 0
        %1589 = vmatmul.mubr.bf16.gmra.mrb[0].mxu0 %v1551
        %v1590 = vpop.f32.mrb[0].mxu0
        %v1591 = vadd.f32 0.0, %v1590
        %v1592 = vpop.f32.mrb[0].mxu0
        %v1593 = vpop.f32.mrb[0].mxu0
        %v1594 = vpop.f32.mrb[0].mxu0
        %1595 = vdwg.mxu0
        %v1596 = vrcp.pop %v1397
        %v1597 = vrcp.pop %v1400
        %v1598 = vrcp.pop %v1403
        %v1599 = vrcp.pop %v1406
        %v1600 = vmul.f32 %v1453, %v1596
        %v1601 = vmul.f32 %v1499, %v1597
        %v1602 = vmul.f32 %v1545, %v1598
        %v1603 = vmul.f32 %v1591, %v1599
        %v1604 = vcombine.low %v1600, %v1602
        %v1605 = vcombine.high %v1600, %v1602
        %v1607 = vunpack.c.l.s4 1983009808
        %v1608 = vunpack.c.0.s8 %v1607
        %v1609 = vlaneseq
        %v1610 = vshrl.u32 %v1609, 7
        %v1611 = vsub.s32 %v1608, %v1610
        %v1612 = vrot.slane %v1604, %v1611
        %v1614 = vunpack.c.l.s4 1983009808
        %v1615 = vunpack.c.0.s8 %v1614
        %v1616 = vlaneseq
        %v1617 = vshrl.u32 %v1616, 7
        %v1618 = vsub.s32 %v1615, %v1617
        %v1619 = vrot.slane %v1605, %v1618
        %v1620 = vcombine.low %v1601, %v1603
        %v1621 = vcombine.high %v1601, %v1603
        %v1623 = vunpack.c.l.s4 1983009808
        %v1624 = vunpack.c.0.s8 %v1623
        %v1625 = vlaneseq
        %v1626 = vshrl.u32 %v1625, 7
        %v1627 = vsub.s32 %v1624, %v1626
        %v1628 = vrot.slane %v1620, %v1627
        %v1630 = vunpack.c.l.s4 1983009808
        %v1631 = vunpack.c.0.s8 %v1630
        %v1632 = vlaneseq
        %v1633 = vshrl.u32 %v1632, 7
        %v1634 = vsub.s32 %v1631, %v1633
        %v1635 = vrot.slane %v1621, %v1634
        %v1636 = vcombine.low %v1612, %v1628
        %v1637 = vcombine.high %v1612, %v1628
        %v1639 = vunpack.c.l.s4 1934713408
        %v1640 = vunpack.c.0.s8 %v1639
        %v1641 = vlaneseq
        %v1642 = vshrl.u32 %v1641, 7
        %v1643 = vsub.s32 %v1640, %v1642
        %v1644 = vrot.slane %v1636, %v1643
        %v1646 = vunpack.c.l.s4 1934713408
        %v1647 = vunpack.c.0.s8 %v1646
        %v1648 = vlaneseq
        %v1649 = vshrl.u32 %v1648, 7
        %v1650 = vsub.s32 %v1647, %v1649
        %v1651 = vrot.slane %v1637, %v1650
        %v1652 = vcombine.low %v1619, %v1635
        %v1653 = vcombine.high %v1619, %v1635
        %v1655 = vunpack.c.l.s4 1934713408
        %v1656 = vunpack.c.0.s8 %v1655
        %v1657 = vlaneseq
        %v1658 = vshrl.u32 %v1657, 7
        %v1659 = vsub.s32 %v1656, %v1658
        %v1660 = vrot.slane %v1652, %v1659
        %v1662 = vunpack.c.l.s4 1934713408
        %v1663 = vunpack.c.0.s8 %v1662
        %v1664 = vlaneseq
        %v1665 = vshrl.u32 %v1664, 7
        %v1666 = vsub.s32 %v1663, %v1665
        %v1667 = vrot.slane %v1653, %v1666
        %v1668 = vcombine.high %v1644, 0.0
        %v1669 = vcombine.high %v1651, 0.0
        %v1670 = vcombine.high %v1660, 0.0
        %v1671 = vcombine.high %v1667, 0.0
        %v1672 = vcombine.low %v1644, %v1651
        %v1674 = vunpack.c.l.s4 1983009808
        %v1675 = vunpack.c.0.s8 %v1674
        %v1676 = vlaneseq
        %v1677 = vshrl.u32 %v1676, 7
        %v1678 = vsub.s32 %v1675, %v1677
        %v1679 = vrot.slane %v1672, %v1678
        %v1680 = vcombine.low %v1668, %v1669
        %v1682 = vunpack.c.l.s4 1983009808
        %v1683 = vunpack.c.0.s8 %v1682
        %v1684 = vlaneseq
        %v1685 = vshrl.u32 %v1684, 7
        %v1686 = vsub.s32 %v1683, %v1685
        %v1687 = vrot.slane %v1680, %v1686
        %v1688 = vcombine.low %v1660, %v1667
        %v1690 = vunpack.c.l.s4 1983009808
        %v1691 = vunpack.c.0.s8 %v1690
        %v1692 = vlaneseq
        %v1693 = vshrl.u32 %v1692, 7
        %v1694 = vsub.s32 %v1691, %v1693
        %v1695 = vrot.slane %v1688, %v1694
        %v1696 = vcombine.low %v1670, %v1671
        %v1698 = vunpack.c.l.s4 1983009808
        %v1699 = vunpack.c.0.s8 %v1698
        %v1700 = vlaneseq
        %v1701 = vshrl.u32 %v1700, 7
        %v1702 = vsub.s32 %v1699, %v1701
        %v1703 = vrot.slane %v1696, %v1702
        %v1704 = vcombine.low %v1679, %v1687
        %v1705 = vcombine.high %v1679, %v1687
        %v1707 = vunpack.c.l.s4 1934713408
        %v1708 = vunpack.c.0.s8 %v1707
        %v1709 = vlaneseq
        %v1710 = vshrl.u32 %v1709, 7
        %v1711 = vsub.s32 %v1708, %v1710
        %v1712 = vrot.slane %v1704, %v1711
        %v1714 = vunpack.c.l.s4 1934713408
        %v1715 = vunpack.c.0.s8 %v1714
        %v1716 = vlaneseq
        %v1717 = vshrl.u32 %v1716, 7
        %v1718 = vsub.s32 %v1715, %v1717
        %v1719 = vrot.slane %v1705, %v1718
        %v1720 = vcombine.low %v1695, %v1703
        %v1721 = vcombine.high %v1695, %v1703
        %v1723 = vunpack.c.l.s4 1934713408
        %v1724 = vunpack.c.0.s8 %v1723
        %v1725 = vlaneseq
        %v1726 = vshrl.u32 %v1725, 7
        %v1727 = vsub.s32 %v1724, %v1726
        %v1728 = vrot.slane %v1720, %v1727
        %v1730 = vunpack.c.l.s4 1934713408
        %v1731 = vunpack.c.0.s8 %v1730
        %v1732 = vlaneseq
        %v1733 = vshrl.u32 %v1732, 7
        %v1734 = vsub.s32 %v1731, %v1733
        %v1735 = vrot.slane %v1721, %v1734
        %v1736 = vcombine.low %v1712, %v1728
        %v1737 = vcombine.high %v1712, %v1728
        %v1738 = vcombine.low %v1719, %v1735
        %v1739 = vcombine.high %v1719, %v1735
        %1741 = vrot.lane.b32.xlu0 %v1737, 8
        %v1742 = vpop.permute.xlu0 %1741
        %1745 = vrot.lane.b32.xlu0 %v1738, 16
        %v1746 = vpop.permute.xlu0 %1745
        %1749 = vrot.lane.b32.xlu0 %v1739, 24
        %v1750 = vpop.permute.xlu0 %1749
        %v1752 = vsel %vm1186, %v1736, %v1742
        %vm1753 = vcmask 130048
        %v1754 = vsel %vm1753, %v1752, %v1746
        %vm1755 = vcmask 195584
        %v1756 = vsel %vm1755, %v1754, %v1750
        %v1757 = vpack.c.bf16 %v1756, %v1756
        %v1758 = vld [vmem:[#allocation8] sm:$0xf]
        %v1759 = vld [vmem:[#allocation8 + $0x4] sm:$0xf]
        %v1760 = vld [vmem:[#allocation8 + $0x8] sm:$0xf]
        %v1761 = vld [vmem:[#allocation8 + $0xc] sm:$0xf]
        %v1762 = vld [vmem:[#allocation10] sm:$0x1]
        %v1764 = vlaneseq
        %v1765 = vshrl.u32 %v1764, 7
        %v1766 = vsub.s32 0, %v1765
        %v1767 = vrot.slane %v1762, %v1766
        %v1773 = vunpack.c.l.b16 %v1758
        %v1774 = vunpack.c.l.b16 %v1759
        %v1775 = vunpack.c.l.b16 %v1760
        %v1776 = vunpack.c.l.b16 %v1761
        %v1777 = vpack.c.b16 %v1774, %v1773
        %v1778 = vpack.c.b16 %v1776, %v1775
        %v1780 = vsel %vm666, %v1757, 0
        %v1783 = vsel %vm666, %v1777, 0
        %v1786 = vsel %vm666, %v1778, 0
        %1788 = vmatprep.subr.bf16.mxu0 0
        %1789 = vmatpush1.bf16.xpose.msra.mxu0 %v1783
        %1790 = vmatprep.subr.bf16.mxu0 0
        %1791 = vmatpush1.bf16.xpose.msra.mxu0 %v1786
        %1792 = vmatprep.subr.bf16.mxu0 0
        %1793 = vmatpush1.bf16.xpose.msra.mxu0 0
        %1794 = vmatprep.subr.bf16.mxu0 0
        %1795 = vmatpush1.bf16.xpose.msra.mxu0 0
        %1796 = vmatprep.subr.bf16.mxu0 0
        %1797 = vmatpush1.bf16.xpose.msra.mxu0 0
        %1798 = vmatprep.subr.bf16.mxu0 0
        %1799 = vmatpush1.bf16.xpose.msra.mxu0 0
        %1800 = vmatprep.subr.bf16.mxu0 0
        %1801 = vmatpush1.bf16.xpose.msra.mxu0 0
        %1802 = vmatprep.subr.bf16.mxu0 0
        %1803 = vmatpush1.bf16.xpose.msra.mxu0 0
        %1804 = vmatprep.subr.bf16.mxu0 0
        %1805 = vmatpush1.bf16.xpose.msra.mxu0 0
        %1806 = vmatprep.subr.bf16.mxu0 0
        %1807 = vmatpush1.bf16.xpose.msra.mxu0 0
        %1808 = vmatprep.subr.bf16.mxu0 0
        %1809 = vmatpush1.bf16.xpose.msra.mxu0 0
        %1810 = vmatprep.subr.bf16.mxu0 0
        %1811 = vmatpush1.bf16.xpose.msra.mxu0 0
        %1812 = vmatprep.subr.bf16.mxu0 0
        %1813 = vmatpush1.bf16.xpose.msra.mxu0 0
        %1814 = vmatprep.subr.bf16.mxu0 0
        %1815 = vmatpush1.bf16.xpose.msra.mxu0 0
        %1816 = vmatprep.subr.bf16.mxu0 0
        %1817 = vmatpush1.bf16.xpose.msra.mxu0 0
        %1818 = vmatprep.subr.bf16.mxu0 0
        %1819 = vmatpush1.bf16.xpose.msra.mxu0 0
        %1820 = vmatprep.mubr.bf16.mxu0 0
        %1821 = vmatmul.mubr.bf16.gmra.mrb[0].mxu0 %v1780
        %v1822 = vpop.f32.mrb[0].mxu0
        %v1823 = vadd.f32 %v1767, %v1822
        %v1824 = vpop.f32.mrb[0].mxu0
        %v1825 = vpop.f32.mrb[0].mxu0
        %v1826 = vpop.f32.mrb[0].mxu0
        %1827 = vdwg.mxu0
        %v1828 = vadd.f32 %v615, %v1823
        %v1829 = vsel %vm666, %v1828, 0.0
        %1830 = vadd.xlane.f32.xlu0 %v1829
        %v1831 = vpop.xlane.xlu0 %1830
        %v1832 = vrcp.pop 32.0
        %v1833 = vmul.f32 %v1831, %v1832
        %v1834 = vsub.f32 %v1828, %v1833
        %v1835 = vmul.f32 %v1834, %v1834
        %v1836 = vsel %vm666, %v1835, 0.0
        %1837 = vadd.xlane.f32.xlu0 %v1836
        %v1838 = vpop.xlane.xlu0 %1837
        %v1839 = vmul.f32 %v1838, %v1832
        %v1840 = vadd.f32 %v1839, 1e-05
        %v1841 = vrsqrt.pop %v1840
        %v1842 = vmul.f32 %v1834, %v1841
        %v1843 = vld [vmem:[#allocation11] sm:$0x1]
        %v1845 = vlaneseq
        %v1846 = vshrl.u32 %v1845, 7
        %v1847 = vsub.s32 0, %v1846
        %v1848 = vrot.slane %v1843, %v1847
        %v1850 = vmul.f32 %v1842, %v1848
        %v1851 = vld [vmem:[#allocation13] sm:$0x1]
        %v1853 = vlaneseq
        %v1854 = vshrl.u32 %v1853, 7
        %v1855 = vsub.s32 0, %v1854
        %v1856 = vrot.slane %v1851, %v1855
        %v1858 = vadd.f32 %v1850, %v1856
        %v1859 = vpack.c.bf16 %v1858, %v1858
        %v1860 = vld [vmem:[#allocation14] sm:$0xf]
        %v1861 = vld [vmem:[#allocation14 + $0x4] sm:$0xf]
        %v1862 = vld [vmem:[#allocation14 + $0x8] sm:$0xf]
        %v1863 = vld [vmem:[#allocation14 + $0xc] sm:$0xf]
        %v1864 = vld [vmem:[#allocation14 + $0x10] sm:$0xf]
        %v1865 = vld [vmem:[#allocation14 + $0x14] sm:$0xf]
        %v1866 = vld [vmem:[#allocation14 + $0x18] sm:$0xf]
        %v1867 = vld [vmem:[#allocation14 + $0x1c] sm:$0xf]
        %v1868 = vld [vmem:[#allocation16] sm:$0x1]
        %v1870 = vlaneseq
        %v1871 = vshrl.u32 %v1870, 7
        %v1872 = vsub.s32 0, %v1871
        %v1873 = vrot.slane %v1868, %v1872
        %v1883 = vunpack.c.l.b16 %v1860
        %v1884 = vunpack.c.l.b16 %v1861
        %v1885 = vunpack.c.l.b16 %v1862
        %v1886 = vunpack.c.l.b16 %v1863
        %v1887 = vunpack.c.l.b16 %v1864
        %v1888 = vunpack.c.l.b16 %v1865
        %v1889 = vunpack.c.l.b16 %v1866
        %v1890 = vunpack.c.l.b16 %v1867
        %v1891 = vpack.c.b16 %v1884, %v1883
        %v1892 = vpack.c.b16 %v1886, %v1885
        %v1893 = vpack.c.b16 %v1888, %v1887
        %v1894 = vpack.c.b16 %v1890, %v1889
        %v1896 = vsel %vm666, %v1859, 0
        %v1899 = vsel %vm666, %v1891, 0
        %v1902 = vsel %vm666, %v1892, 0
        %v1905 = vsel %vm666, %v1893, 0
        %v1908 = vsel %vm666, %v1894, 0
        %1910 = vmatprep.subr.bf16.mxu0 0
        %1911 = vmatpush1.bf16.xpose.msra.mxu0 %v1899
        %1912 = vmatprep.subr.bf16.mxu0 0
        %1913 = vmatpush1.bf16.xpose.msra.mxu0 %v1902
        %1914 = vmatprep.subr.bf16.mxu0 0
        %1915 = vmatpush1.bf16.xpose.msra.mxu0 %v1905
        %1916 = vmatprep.subr.bf16.mxu0 0
        %1917 = vmatpush1.bf16.xpose.msra.mxu0 %v1908
        %1918 = vmatprep.subr.bf16.mxu0 0
        %1919 = vmatpush1.bf16.xpose.msra.mxu0 0
        %1920 = vmatprep.subr.bf16.mxu0 0
        %1921 = vmatpush1.bf16.xpose.msra.mxu0 0
        %1922 = vmatprep.subr.bf16.mxu0 0
        %1923 = vmatpush1.bf16.xpose.msra.mxu0 0
        %1924 = vmatprep.subr.bf16.mxu0 0
        %1925 = vmatpush1.bf16.xpose.msra.mxu0 0
        %1926 = vmatprep.subr.bf16.mxu0 0
        %1927 = vmatpush1.bf16.xpose.msra.mxu0 0
        %1928 = vmatprep.subr.bf16.mxu0 0
        %1929 = vmatpush1.bf16.xpose.msra.mxu0 0
        %1930 = vmatprep.subr.bf16.mxu0 0
        %1931 = vmatpush1.bf16.xpose.msra.mxu0 0
        %1932 = vmatprep.subr.bf16.mxu0 0
        %1933 = vmatpush1.bf16.xpose.msra.mxu0 0
        %1934 = vmatprep.subr.bf16.mxu0 0
        %1935 = vmatpush1.bf16.xpose.msra.mxu0 0
        %1936 = vmatprep.subr.bf16.mxu0 0
        %1937 = vmatpush1.bf16.xpose.msra.mxu0 0
        %1938 = vmatprep.subr.bf16.mxu0 0
        %1939 = vmatpush1.bf16.xpose.msra.mxu0 0
        %1940 = vmatprep.subr.bf16.mxu0 0
        %1941 = vmatpush1.bf16.xpose.msra.mxu0 0
        %1942 = vmatprep.mubr.bf16.mxu0 0
        %1943 = vmatmul.mubr.bf16.gmra.mrb[0].mxu0 %v1896
        %v1944 = vpop.f32.mrb[0].mxu0
        %v1945 = vadd.f32 %v1873, %v1944
        %v1946 = vpop.f32.mrb[0].mxu0
        %v1947 = vpop.f32.mrb[0].mxu0
        %v1948 = vpop.f32.mrb[0].mxu0
        %1949 = vdwg.mxu0
        %v1950 = vmax.f32 %v1945, 0.0
        %v1951 = vpack.c.bf16 %v1950, %v1950
        %v1952 = vld [vmem:[#allocation17] sm:$0xf]
        %v1953 = vld [vmem:[#allocation17 + $0x4] sm:$0xf]
        %v1954 = vld [vmem:[#allocation17 + $0x8] sm:$0xf]
        %v1955 = vld [vmem:[#allocation17 + $0xc] sm:$0xf]
        %v1956 = vld [vmem:[#allocation19] sm:$0x1]
        %v1958 = vlaneseq
        %v1959 = vshrl.u32 %v1958, 7
        %v1960 = vsub.s32 0, %v1959
        %v1961 = vrot.slane %v1956, %v1960
        %v1967 = vunpack.c.l.b16 %v1952
        %v1968 = vunpack.c.l.b16 %v1953
        %v1969 = vunpack.c.l.b16 %v1954
        %v1970 = vunpack.c.l.b16 %v1955
        %v1971 = vpack.c.b16 %v1968, %v1967
        %v1972 = vpack.c.b16 %v1970, %v1969
        %vm1973 = vcmask 523264
        %v1975 = vsel %vm1973, %v1951, 0
        %v1978 = vsel %vm1973, %v1971, 0
        %v1981 = vsel %vm1973, %v1972, 0
        %1983 = vmatprep.subr.bf16.mxu0 0
        %1984 = vmatpush1.bf16.xpose.msra.mxu0 %v1978
        %1985 = vmatprep.subr.bf16.mxu0 0
        %1986 = vmatpush1.bf16.xpose.msra.mxu0 %v1981
        %1987 = vmatprep.subr.bf16.mxu0 0
        %1988 = vmatpush1.bf16.xpose.msra.mxu0 0
        %1989 = vmatprep.subr.bf16.mxu0 0
        %1990 = vmatpush1.bf16.xpose.msra.mxu0 0
        %1991 = vmatprep.subr.bf16.mxu0 0
        %1992 = vmatpush1.bf16.xpose.msra.mxu0 0
        %1993 = vmatprep.subr.bf16.mxu0 0
        %1994 = vmatpush1.bf16.xpose.msra.mxu0 0
        %1995 = vmatprep.subr.bf16.mxu0 0
        %1996 = vmatpush1.bf16.xpose.msra.mxu0 0
        %1997 = vmatprep.subr.bf16.mxu0 0
        %1998 = vmatpush1.bf16.xpose.msra.mxu0 0
        %1999 = vmatprep.subr.bf16.mxu0 0
        %2000 = vmatpush1.bf16.xpose.msra.mxu0 0
        %2001 = vmatprep.subr.bf16.mxu0 0
        %2002 = vmatpush1.bf16.xpose.msra.mxu0 0
        %2003 = vmatprep.subr.bf16.mxu0 0
        %2004 = vmatpush1.bf16.xpose.msra.mxu0 0
        %2005 = vmatprep.subr.bf16.mxu0 0
        %2006 = vmatpush1.bf16.xpose.msra.mxu0 0
        %2007 = vmatprep.subr.bf16.mxu0 0
        %2008 = vmatpush1.bf16.xpose.msra.mxu0 0
        %2009 = vmatprep.subr.bf16.mxu0 0
        %2010 = vmatpush1.bf16.xpose.msra.mxu0 0
        %2011 = vmatprep.subr.bf16.mxu0 0
        %2012 = vmatpush1.bf16.xpose.msra.mxu0 0
        %2013 = vmatprep.subr.bf16.mxu0 0
        %2014 = vmatpush1.bf16.xpose.msra.mxu0 0
        %2015 = vmatprep.mubr.bf16.mxu0 0
        %2016 = vmatmul.mubr.bf16.gmra.mrb[0].mxu0 %v1975
        %v2017 = vpop.f32.mrb[0].mxu0
        %v2018 = vadd.f32 %v1961, %v2017
        %v2019 = vpop.f32.mrb[0].mxu0
        %v2020 = vpop.f32.mrb[0].mxu0
        %v2021 = vpop.f32.mrb[0].mxu0
        %2022 = vdwg.mxu0
        %v2023 = vadd.f32 %v1858, %v2018
        %v2024 = vsel %vm666, %v2023, 0.0
        %2025 = vadd.xlane.f32.xlu0 %v2024
        %v2026 = vpop.xlane.xlu0 %2025
        %v2027 = vmul.f32 %v2026, %v1832
        %v2028 = vsub.f32 %v2023, %v2027
        %v2029 = vmul.f32 %v2028, %v2028
        %v2030 = vsel %vm666, %v2029, 0.0
        %2031 = vadd.xlane.f32.xlu0 %v2030
        %v2032 = vpop.xlane.xlu0 %2031
        %v2033 = vmul.f32 %v2032, %v1832
        %v2034 = vadd.f32 %v2033, 1e-05
        %v2035 = vrsqrt.pop %v2034
        %v2036 = vmul.f32 %v2028, %v2035
        %v2037 = vld [vmem:[#allocation20] sm:$0x1]
        %v2039 = vlaneseq
        %v2040 = vshrl.u32 %v2039, 7
        %v2041 = vsub.s32 0, %v2040
        %v2042 = vrot.slane %v2037, %v2041
        %v2044 = vmul.f32 %v2036, %v2042
        %v2045 = vld [vmem:[#allocation22] sm:$0x1]
        %v2047 = vlaneseq
        %v2048 = vshrl.u32 %v2047, 7
        %v2049 = vsub.s32 0, %v2048
        %v2050 = vrot.slane %v2045, %v2049
        %v2052 = vadd.f32 %v2044, %v2050
        %2053 = vst.msk [vmem:[%s613] sm:$0xff] %vm666, %v2052
        %s2054 = sand.u32 %s322, 1
        %s2055 = scalar_lea.sflag [#allocation4], %s2054
        %s2056 = sand.u32 %s322, 1
        %s2057 = smul.addr %s2056, 8
        %s2058 = scalar_lea.vmem [#allocation23], %s2057
        // Predicated region
        $region125: #{production_transformer.3} parent=71 // pred_check
          %p2059 = pneg %p332
        $region126: #{production_transformer.3} parent=71 // pred_check_branch
          %2061 = sbr.rel (%p2059) target = $region128
        $region127: #{production_transformer.3} parent=71 // pred_region
          %s2063 = ssub.s32 128, 128
          %2064 = vsyncadd %s2055, %s2063
          %s2065 = smul.addr %s36, 128
          %s2066 = scalar_lea.hbm %s13, %s2065
          %s2068 = sshll.u32 %s2058, 4
          %s2069 = int_to_ptr.vmem [resolvable:$true] %s2068
          %2071 = dma.vmem_to_hbm [thread:$0]  %s2069, 128, %s2066, %s2055
        $region128: #{production_transformer.3} parent=71 // pred_fallthru
          _
      $region72: #{production_transformer.3} parent=5 // pred_fallthru
        _
      %p2072 = scmp.le.s32.totalorder 2, %s31
      // Predicated region
      $region129: #{production_transformer.3} parent=5 // pred_check
        %p2073 = pneg %p2072
      $region130: #{production_transformer.3} parent=5 // pred_check_branch
        %2075 = sbr.rel (%p2073) target = $region132
      $region131: #{production_transformer.3} parent=5 // pred_region
        %s2076 = ssub.s32 %s31, 2
        // Predicated region
        $region133: #{production_transformer.3} parent=131 // pred_check
          %p2077 = pneg %p338
        $region134: #{production_transformer.3} parent=131 // pred_check_branch
          %2079 = sbr.rel (%p2077) target = $region136
        $region135: #{production_transformer.3} parent=131 // pred_region
          %s2080 = sand.u32 %s323, 1
          %s2081 = scalar_lea.sflag [#allocation4], %s2080
          %s2082 = sand.u32 %s323, 1
          %s2083 = smul.addr %s2082, 8
          %s2084 = scalar_lea.vmem [#allocation23], %s2083
          %2085 = dma.done %s2081, 128
        $region136: #{production_transformer.3} parent=131 // pred_fallthru
          _
      $region132: #{production_transformer.3} parent=5 // pred_fallthru
        _
    $region6: #{production_transformer.3} parent=1 // loop_footer
      %s35 = sadd.s32 1, %s31
    $region7: #{production_transformer.3} parent=1 // loop_footer_branch
      %30 = sbr.rel target = $region3
    $region8: #{production_transformer.3} parent=1 // loop_exit
      _
    %2086 = vsyncpa [#allocation3], 1
    %s2087 = scalar_lea.sflag [#allocation3], 1
    %2088 = vsyncpa %s2087, 1
    %2089 = vsyncpa [#allocation6], 1
    %2090 = vsyncpa [#allocation9], 1
    %2091 = vsyncpa [#allocation12], 1
    %2092 = vsyncpa [#allocation15], 1
    %2093 = vsyncpa [#allocation18], 1
    %2094 = vsyncpa [#allocation21], 1
    %2095 = vsyncpa [#allocation4], 1
    %s2096 = scalar_lea.sflag [#allocation4], 1
    %2097 = vsyncpa %s2096, 1

</llo_original>
